<compile_context>
chip_gen: v7x
topology: tpu7x:2x2x1
jax: 0.10.0
libtpu: 0.0.40
codegen_flags: <defaults>
</compile_context>

<pallas_src>
import functools

import jax
import jax.numpy as jnp
from jax.experimental import pallas as pl
from jax.experimental.pallas import tpu as pltpu


def _layer_norm(x, gamma, beta, eps=1e-5):
    """LayerNorm in fp32 (matches the fp16-safe LayerNorm subclass)."""
    xf = x.astype(jnp.float32)
    mu = jnp.mean(xf, axis=-1, keepdims=True)
    var = jnp.mean((xf - mu) ** 2, axis=-1, keepdims=True)
    normed = (xf - mu) * jax.lax.rsqrt(var + eps)
    return normed * gamma + beta


def _transformer_kernel(x_ref,
                        g1_ref, b1_ref,
                        wqkv_ref, bqkv_ref,
                        wo_ref, bo_ref,
                        g2_ref, b2_ref,
                        wfc_ref, bfc_ref,
                        wpr_ref, bpr_ref,
                        o_ref, *, heads):
    layer = pl.program_id(1)

    # Layer 0: seed the residual stream from the input block. For layer > 0 the output
    # block (constant block index across the layer axis) is still VMEM-resident and
    # carries the residual stream; it is only written back to HBM after the last layer.
    @pl.when(layer == 0)
    def _():
        o_ref[...] = x_ref[...]

    xb = o_ref[...]                              # (B, L, D) f32 residual stream
    B, L, D = xb.shape
    hd = D // heads
    M = B * L
    x = xb.reshape(M, D)                         # flatten batch into M for all projections

    # ---------------- attention branch ----------------
    h = _layer_norm(x, g1_ref[...], b1_ref[...]).astype(jnp.bfloat16)
    qkv = jnp.dot(h, wqkv_ref[...], preferred_element_type=jnp.float32) + bqkv_ref[...]
    # softmax 1/sqrt(hd) scale is pre-folded into the Q columns of wqkv/bqkv
    qkv = qkv.astype(jnp.bfloat16).reshape(B, L, 3 * D)

    attn = jnp.zeros((M, D), jnp.float32)
    for hh in range(heads):                      # static unroll (heads is small)
        q = qkv[:, :, hh * hd:(hh + 1) * hd]                      # (B, L, hd)
        k = qkv[:, :, D + hh * hd:D + (hh + 1) * hd]              # (B, L, hd)
        v = qkv[:, :, 2 * D + hh * hd:2 * D + (hh + 1) * hd]      # (B, L, hd)
        # scores = q_h @ k_h^T per batch element (bf16 operands, f32 accumulate)
        s = jax.lax.dot_general(q, k, (((2,), (2,)), ((0,), (0,))),
                                preferred_element_type=jnp.float32)          # (B, L, L)
        s = s - jnp.max(s, axis=-1, keepdims=True)
        e = jnp.exp(s)
        p = e * pl.reciprocal(jnp.sum(e, axis=-1, keepdims=True), approx=True)
        head_out = jax.lax.dot_general(p.astype(jnp.bfloat16), v,
                                       (((2,), (1,)), ((0,), (0,))),
                                       preferred_element_type=jnp.float32)   # (B, L, hd)
        # Fold the out-projection per head: no attention slab, no masked stores,
        # no VMEM store->load round trip before out_proj.
        attn = attn + jnp.dot(head_out.reshape(M, hd).astype(jnp.bfloat16),
                              wo_ref[hh * hd:(hh + 1) * hd, :],
                              preferred_element_type=jnp.float32)
    x = x + attn + bo_ref[...]

    # ---------------- MLP branch ----------------
    h2 = _layer_norm(x, g2_ref[...], b2_ref[...]).astype(jnp.bfloat16)
    m = jnp.dot(h2, wfc_ref[...], preferred_element_type=jnp.float32) + bfc_ref[...]
    m = (m * jax.nn.sigmoid(1.702 * m)).astype(jnp.bfloat16)                 # QuickGELU in f32
    m = jnp.dot(m, wpr_ref[...], preferred_element_type=jnp.float32) + bpr_ref[...]
    x = x + m

    o_ref[...] = x.reshape(B, L, D)


# ----------------------------- one-time weight prep --------------------------
def prepare_params(params, heads):
    """Hoisted out of the forward path: stack per-layer params along a leading layer
    axis, cast matmul weights to bf16 and fold the 1/sqrt(head_dim) softmax scale into
    the Q columns of the QKV projection."""
    D = params[0]["wqkv"].shape[0]
    assert D % heads == 0, "d_model must be divisible by n_head"
    hd = D // heads
    scale = jnp.float32(1.0 / (hd ** 0.5))

    def stack(key, dtype=jnp.float32, fold_scale=False):
        arrs = []
        for p in params:
            a = p[key]
            if fold_scale:
                a = a.at[..., :D].multiply(scale)      # scale only the Q columns
            arrs.append(a)
        return jnp.stack(arrs).astype(dtype)

    return {
        "g1": stack("g1"), "b1": stack("b1"),
        "wqkv": stack("wqkv", jnp.bfloat16, fold_scale=True),
        "bqkv": stack("bqkv", fold_scale=True),
        "wo": stack("wo", jnp.bfloat16), "bo": stack("bo"),
        "g2": stack("g2"), "b2": stack("b2"),
        "wfc": stack("wfc", jnp.bfloat16), "bfc": stack("bfc"),
        "wpr": stack("wpr", jnp.bfloat16), "bpr": stack("bpr"),
    }


# ----------------------------- tiling / VMEM heuristics -----------------------
def _pick_vmem_limit():
    """Chip-aware VMEM limit with headroom (v7x ~48 MiB, v5e/v6e ~100 MiB)."""
    try:
        cap = int(pltpu.get_tpu_info().vmem_capacity_bytes)
    except Exception:
        cap = 64 * 1024 * 1024
    return max(32 * 1024 * 1024, min(100 * 1024 * 1024, cap - 16 * 1024 * 1024))


def _pick_batch_tile(N, L, D, vmem_limit_bytes, max_tile=16):
    """Largest divisor of N (<= max_tile) whose activation footprint fits next to the
    double-buffered bf16 weights inside the VMEM limit."""
    per_elem = (L * D * 4 * 3                 # residual/out block + f32 temporaries
                + L * 3 * D * (4 + 2)         # qkv f32 + bf16
                + L * 4 * D * (4 + 2)         # mlp hidden f32 + bf16
                + L * L * 4)                  # one (L, L) f32 score slab per head (reused)
    weights = 2 * 12 * D * D * 2              # double-buffered bf16 matmul weights
    budget = vmem_limit_bytes - weights
    cap = max(1, min(max_tile, budget // per_elem)) if budget > per_elem else 1
    bt = 1
    for cand in range(1, min(N, int(cap)) + 1):
        if N % cand == 0:
            bt = cand
    return bt


# ----------------------------- pallas_call wrapper ----------------------------
def _transformer_call(xb, w, heads, layers):
    """xb: (N, L, D) f32 -> (N, L, D) f32 through all residual blocks (one kernel)."""
    N, L, D = xb.shape
    assert D % heads == 0, "d_model must be divisible by n_head"

    vmem_limit = _pick_vmem_limit()
    b_tile = _pick_batch_tile(N, L, D, vmem_limit)
    kernel = functools.partial(_transformer_kernel, heads=heads)

    def wspec(per_layer_shape):
        nd = len(per_layer_shape)
        return pl.BlockSpec((pl.Squeezed(),) + tuple(per_layer_shape),
                            lambda b, l, _nd=nd: (l,) + (0,) * _nd)

    x_spec = pl.BlockSpec((b_tile, L, D), lambda b, l: (b, 0, 0))
    out_spec = pl.BlockSpec((b_tile, L, D), lambda b, l: (b, 0, 0))

    weight_order = ("g1", "b1", "wqkv", "bqkv", "wo", "bo",
                    "g2", "b2", "wfc", "bfc", "wpr", "bpr")
    weight_args = [w[k] for k in weight_order]
    weight_specs = [wspec(a.shape[1:]) for a in weight_args]

    # Advisory cost estimate so XLA schedules the surrounding transposes / ops well.
    proj_flops = 2 * N * L * 12 * D * D
    attn_flops = 4 * N * L * L * D
    flops = layers * (proj_flops + attn_flops)
    transcendentals = layers * N * (heads * L * L + 4 * L * D)
    weight_bytes = 12 * D * D * 2 + 13 * D * 4
    bytes_accessed = (pl.cdiv(N, b_tile) * layers * weight_bytes + 2 * N * L * D * 4)

    return pl.pallas_call(
        kernel,
        out_shape=jax.ShapeDtypeStruct((N, L, D), jnp.float32),
        grid=(N // b_tile, layers),
        in_specs=[x_spec] + weight_specs,
        out_specs=out_spec,
        input_output_aliases={0: 0},                  # residual stream updated in place
        cost_estimate=pl.CostEstimate(flops=int(flops),
                                      transcendentals=int(transcendentals),
                                      bytes_accessed=int(bytes_accessed)),
        compiler_params=pltpu.CompilerParams(
            dimension_semantics=("parallel", "arbitrary"),
            vmem_limit_bytes=int(vmem_limit)),
    )(xb, *weight_args)


def transformer_forward(x, w, heads):
    """x: (L, N, D) -- same axis convention as the PyTorch module. `w` is the output of
    prepare_params (precomputed once, outside the per-forward path)."""
    xb = jnp.transpose(x, (1, 0, 2))            # (N, L, D) for the kernel
    layers = w["wqkv"].shape[0]
    out = _transformer_call(xb, w, heads, layers)
    return jnp.transpose(out, (1, 0, 2))


# ----------------------------- parameters -----------------------------------
def init_params(key, width, layers):
    D = width
    params = []
    for _ in range(layers):
        keys = jax.random.split(key, 9)
        key = keys[0]
        p = {
            # LayerNorm 1 / 2
            "g1": jnp.ones((1, D), jnp.float32),
            "b1": jnp.zeros((1, D), jnp.float32),
            "g2": jnp.ones((1, D), jnp.float32),
            "b2": jnp.zeros((1, D), jnp.float32),
            # attention: in_proj (stored transposed: x @ W), out_proj
            "wqkv": 0.02 * jax.random.normal(keys[1], (D, 3 * D), jnp.float32),
            "bqkv": 0.02 * jax.random.normal(keys[2], (1, 3 * D), jnp.float32),
            "wo":   0.02 * jax.random.normal(keys[3], (D, D), jnp.float32),
            "bo":   0.02 * jax.random.normal(keys[4], (1, D), jnp.float32),
            # MLP: c_fc (D -> 4D), c_proj (4D -> D), stored transposed
            "wfc":  0.02 * jax.random.normal(keys[5], (D, 4 * D), jnp.float32),
            "bfc":  0.02 * jax.random.normal(keys[6], (1, 4 * D), jnp.float32),
            "wpr":  0.02 * jax.random.normal(keys[7], (4 * D, D), jnp.float32),
            "bpr":  0.02 * jax.random.normal(keys[8], (1, D), jnp.float32),
        }
        params.append(p)
    return params


# ----------------------------- pure-JAX reference ----------------------------
def reference_forward(x, params, heads):
    def lnorm(t, g, b):
        mu = t.mean(-1, keepdims=True)
        var = ((t - mu) ** 2).mean(-1, keepdims=True)
        return (t - mu) * jax.lax.rsqrt(var + 1e-5) * g + b

    L, N, D = x.shape
    hd = D // heads
    for p in params:
        h = lnorm(x, p["g1"], p["b1"])
        qkv = h @ p["wqkv"] + p["bqkv"]
        q, k, v = qkv[..., :D], qkv[..., D:2 * D], qkv[..., 2 * D:]
        qr = q.reshape(L, N, heads, hd)
        kr = k.reshape(L, N, heads, hd)
        vr = v.reshape(L, N, heads, hd)
        s = jnp.einsum("lnhd,mnhd->nhlm", qr, kr) / jnp.sqrt(hd)
        pmat = jax.nn.softmax(s, axis=-1)
        o = jnp.einsum("nhlm,mnhd->lnhd", pmat, vr).reshape(L, N, D)
        o = o @ p["wo"] + p["bo"]
        x = x + o
        h2 = lnorm(x, p["g2"], p["b2"])
        m = h2 @ p["wfc"] + p["bfc"]
        m = m * jax.nn.sigmoid(1.702 * m)
        m = m @ p["wpr"] + p["bpr"]
        x = x + m
    return x


if __name__ == "__main__":
    # small shapes: seq=8, batch=2, width=32, heads=4, layers=2
    L, N, D, HEADS, LAYERS = 8, 2, 32, 4, 2

    key = jax.random.PRNGKey(0)
    kx, kp = jax.random.split(key)
    x = jax.random.normal(kx, (L, N, D), jnp.float32)
    params = init_params(kp, D, LAYERS)

    # reference first, so the (internally aliased) kernel input cannot matter
    ref = reference_forward(x, params, HEADS)

    w = prepare_params(params, HEADS)           # one-time weight prep (hoisted out of fwd)
    fwd = jax.jit(functools.partial(transformer_forward, heads=HEADS))
    out = jax.block_until_ready(fwd(x, w))

    assert out.shape == (L, N, D)
    assert bool(jnp.all(jnp.isfinite(out)))
    err = float(jnp.max(jnp.abs(out - ref)))
    # bf16 matmul operands (f32 accumulation) + approx softmax reciprocal -> loose tolerance
    assert jnp.allclose(out, ref, atol=2e-2, rtol=2e-2), err

    print("KERNEL_OK")
</pallas_src>

<mosaic_0001>
module attributes {stable_mosaic.version = 11 : i64} {
  func.func @_transformer_kernel(%arg0: i32, %arg1: i32, %arg2: memref<2x8x32xf32, #tpu.memory_space<vmem>>, %arg3: memref<1x1x32xf32, #tpu.memory_space<vmem>>, %arg4: memref<1x1x32xf32, #tpu.memory_space<vmem>>, %arg5: memref<1x32x96xbf16, #tpu.memory_space<vmem>>, %arg6: memref<1x1x96xf32, #tpu.memory_space<vmem>>, %arg7: memref<1x32x32xbf16, #tpu.memory_space<vmem>>, %arg8: memref<1x1x32xf32, #tpu.memory_space<vmem>>, %arg9: memref<1x1x32xf32, #tpu.memory_space<vmem>>, %arg10: memref<1x1x32xf32, #tpu.memory_space<vmem>>, %arg11: memref<1x32x128xbf16, #tpu.memory_space<vmem>>, %arg12: memref<1x1x128xf32, #tpu.memory_space<vmem>>, %arg13: memref<1x128x32xbf16, #tpu.memory_space<vmem>>, %arg14: memref<1x1x32xf32, #tpu.memory_space<vmem>>, %arg15: memref<2x8x32xf32, #tpu.memory_space<vmem>>) attributes {dimension_semantics = [#tpu.dimension_semantics<parallel>, #tpu.dimension_semantics<arbitrary>], iteration_bounds = array<i64: 1, 2>, scalar_prefetch = 0 : i64, scratch_operands = 0 : i64, tpu.core_type = #tpu.core_type<tc>, window_params = [{transform_indices = @transform_0, window_bounds = array<i64: 2, 8, 32>}, {transform_indices = @transform_1, window_bounds = array<i64: 1, 1, 32>}, {transform_indices = @transform_2, window_bounds = array<i64: 1, 1, 32>}, {transform_indices = @transform_3, window_bounds = array<i64: 1, 32, 96>}, {transform_indices = @transform_4, window_bounds = array<i64: 1, 1, 96>}, {transform_indices = @transform_5, window_bounds = array<i64: 1, 32, 32>}, {transform_indices = @transform_6, window_bounds = array<i64: 1, 1, 32>}, {transform_indices = @transform_7, window_bounds = array<i64: 1, 1, 32>}, {transform_indices = @transform_8, window_bounds = array<i64: 1, 1, 32>}, {transform_indices = @transform_9, window_bounds = array<i64: 1, 32, 128>}, {transform_indices = @transform_10, window_bounds = array<i64: 1, 1, 128>}, {transform_indices = @transform_11, window_bounds = array<i64: 1, 128, 32>}, {transform_indices = @transform_12, window_bounds = array<i64: 1, 1, 32>}, {transform_indices = @transform_13, window_bounds = array<i64: 2, 8, 32>}]} {
    %c0_i32 = arith.constant 0 : i32
    %0 = arith.cmpi eq, %arg1, %c0_i32 : i32
    %1 = arith.extui %0 : i1 to i32
    %c0_i32_0 = arith.constant 0 : i32
    %2 = arith.cmpi ne, %1, %c0_i32_0 : i32
    scf.if %2 {
      %c0_83 = arith.constant 0 : index
      %c0_84 = arith.constant 0 : index
      %c0_85 = arith.constant 0 : index
      %188 = vector.load %arg2[%c0_83, %c0_84, %c0_85] : memref<2x8x32xf32, #tpu.memory_space<vmem>>, vector<2x8x32xf32>
      %c0_86 = arith.constant 0 : index
      %c0_87 = arith.constant 0 : index
      %c0_88 = arith.constant 0 : index
      %189 = vector.load %arg15[%c0_86, %c0_87, %c0_88] : memref<2x8x32xf32, #tpu.memory_space<vmem>>, vector<2x8x32xf32>
      tpu.vector_store %arg15[%c0_86, %c0_87, %c0_88], %188 {strides = array<i32>} : memref<2x8x32xf32, #tpu.memory_space<vmem>>, vector<2x8x32xf32>,
    } else {
    }
    %c0 = arith.constant 0 : index
    %c0_1 = arith.constant 0 : index
    %c0_2 = arith.constant 0 : index
    %3 = vector.load %arg15[%c0, %c0_1, %c0_2] : memref<2x8x32xf32, #tpu.memory_space<vmem>>, vector<2x8x32xf32>
    %4 = vector.shape_cast %3 : vector<2x8x32xf32> to vector<16x32xf32>
    %c0_3 = arith.constant 0 : index
    %c0_4 = arith.constant 0 : index
    %c0_5 = arith.constant 0 : index
    %5 = vector.load %arg3[%c0_3, %c0_4, %c0_5] : memref<1x1x32xf32, #tpu.memory_space<vmem>>, vector<1x1x32xf32>
    %6 = vector.shape_cast %5 : vector<1x1x32xf32> to vector<1x32xf32>
    %c0_6 = arith.constant 0 : index
    %c0_7 = arith.constant 0 : index
    %c0_8 = arith.constant 0 : index
    %7 = vector.load %arg4[%c0_6, %c0_7, %c0_8] : memref<1x1x32xf32, #tpu.memory_space<vmem>>, vector<1x1x32xf32>
    %8 = vector.shape_cast %7 : vector<1x1x32xf32> to vector<1x32xf32>
    %cst = arith.constant dense<0.000000e+00> : vector<16xf32>
    %9 = vector.multi_reduction <add>, %4, %cst [1] : vector<16x32xf32> to vector<16xf32>
    %10 = vector.shape_cast %9 : vector<16xf32> to vector<16x1xf32>
    %cst_9 = arith.constant 3.200000e+01 : f32
    %11 = vector.broadcast %cst_9 : f32 to vector<16x1xf32>
    %12 = arith.divf %10, %11 : vector<16x1xf32>
    %13 = vector.broadcast %12 : vector<16x1xf32> to vector<16x32xf32>
    %14 = arith.subf %4, %13 : vector<16x32xf32>
    %15 = arith.mulf %14, %14 : vector<16x32xf32>
    %cst_10 = arith.constant dense<0.000000e+00> : vector<16xf32>
    %16 = vector.multi_reduction <add>, %15, %cst_10 [1] : vector<16x32xf32> to vector<16xf32>
    %17 = vector.shape_cast %16 : vector<16xf32> to vector<16x1xf32>
    %cst_11 = arith.constant 3.200000e+01 : f32
    %18 = vector.broadcast %cst_11 : f32 to vector<16x1xf32>
    %19 = arith.divf %17, %18 : vector<16x1xf32>
    %20 = vector.broadcast %12 : vector<16x1xf32> to vector<16x32xf32>
    %21 = arith.subf %4, %20 : vector<16x32xf32>
    %cst_12 = arith.constant 9.99999974E-6 : f32
    %22 = vector.broadcast %cst_12 : f32 to vector<16x1xf32>
    %23 = arith.addf %19, %22 : vector<16x1xf32>
    %24 = math.rsqrt %23 : vector<16x1xf32>
    %25 = vector.broadcast %24 : vector<16x1xf32> to vector<16x32xf32>
    %26 = arith.mulf %21, %25 : vector<16x32xf32>
    %27 = vector.broadcast %6 : vector<1x32xf32> to vector<16x32xf32>
    %28 = arith.mulf %26, %27 : vector<16x32xf32>
    %29 = vector.broadcast %8 : vector<1x32xf32> to vector<16x32xf32>
    %30 = arith.addf %28, %29 : vector<16x32xf32>
    %31 = arith.truncf %30 : vector<16x32xf32> to vector<16x32xbf16>
    %c0_13 = arith.constant 0 : index
    %c0_14 = arith.constant 0 : index
    %c0_15 = arith.constant 0 : index
    %32 = vector.load %arg5[%c0_13, %c0_14, %c0_15] : memref<1x32x96xbf16, #tpu.memory_space<vmem>>, vector<1x32x96xbf16>
    %33 = vector.shape_cast %32 : vector<1x32x96xbf16> to vector<32x96xbf16>
    %cst_16 = arith.constant dense<0.000000e+00> : vector<16x96xf32>
    %34 = tpu.matmul %31, %33, %cst_16 {dimension_numbers = #tpu.dot_dimension_numbers<[1], [0], [0], [1], [0, 0, 1, 1], [], []>} : vector<16x32xbf16>, vector<32x96xbf16>, vector<16x96xf32> -> vector<16x96xf32>
    %c0_17 = arith.constant 0 : index
    %c0_18 = arith.constant 0 : index
    %c0_19 = arith.constant 0 : index
    %35 = vector.load %arg6[%c0_17, %c0_18, %c0_19] : memref<1x1x96xf32, #tpu.memory_space<vmem>>, vector<1x1x96xf32>
    %36 = vector.shape_cast %35 : vector<1x1x96xf32> to vector<1x96xf32>
    %37 = vector.broadcast %36 : vector<1x96xf32> to vector<16x96xf32>
    %38 = arith.addf %34, %37 : vector<16x96xf32>
    %39 = arith.truncf %38 : vector<16x96xf32> to vector<16x96xbf16>
    %40 = vector.shape_cast %39 : vector<16x96xbf16> to vector<2x8x96xbf16>
    %cst_20 = arith.constant 0.000000e+00 : f32
    %41 = vector.broadcast %cst_20 : f32 to vector<16x32xf32>
    %42 = vector.extract_strided_slice %40 {offsets = [0, 0, 0], sizes = [2, 8, 8], strides = [1, 1, 1]} : vector<2x8x96xbf16> to vector<2x8x8xbf16>
    %43 = vector.extract_strided_slice %40 {offsets = [0, 0, 32], sizes = [2, 8, 8], strides = [1, 1, 1]} : vector<2x8x96xbf16> to vector<2x8x8xbf16>
    %44 = vector.extract_strided_slice %40 {offsets = [0, 0, 64], sizes = [2, 8, 8], strides = [1, 1, 1]} : vector<2x8x96xbf16> to vector<2x8x8xbf16>
    %cst_21 = arith.constant dense<0.000000e+00> : vector<2x8x8xf32>
    %45 = tpu.matmul %42, %43, %cst_21 {dimension_numbers = #tpu.dot_dimension_numbers<[2], [2], [1], [1], [0, 0, 0, 1, 1, 1], [0], [0]>} : vector<2x8x8xbf16>, vector<2x8x8xbf16>, vector<2x8x8xf32> -> vector<2x8x8xf32>
    %cst_22 = arith.constant dense<0xFF800000> : vector<2x8xf32>
    %46 = vector.multi_reduction <maximumf>, %45, %cst_22 [2] : vector<2x8x8xf32> to vector<2x8xf32>
    %47 = vector.shape_cast %46 : vector<2x8xf32> to vector<2x8x1xf32>
    %48 = vector.broadcast %47 : vector<2x8x1xf32> to vector<2x8x8xf32>
    %49 = arith.subf %45, %48 : vector<2x8x8xf32>
    %50 = math.exp %49 : vector<2x8x8xf32>
    %cst_23 = arith.constant dense<0.000000e+00> : vector<2x8xf32>
    %51 = vector.multi_reduction <add>, %50, %cst_23 [2] : vector<2x8x8xf32> to vector<2x8xf32>
    %52 = vector.shape_cast %51 : vector<2x8xf32> to vector<2x8x1xf32>
    %53 = tpu.reciprocal %52 {approx = true} : vector<2x8x1xf32> -> vector<2x8x1xf32>
    %54 = vector.broadcast %53 : vector<2x8x1xf32> to vector<2x8x8xf32>
    %55 = arith.mulf %50, %54 : vector<2x8x8xf32>
    %56 = arith.truncf %55 : vector<2x8x8xf32> to vector<2x8x8xbf16>
    %cst_24 = arith.constant dense<0.000000e+00> : vector<2x8x8xf32>
    %57 = tpu.matmul %56, %44, %cst_24 {dimension_numbers = #tpu.dot_dimension_numbers<[2], [1], [1], [2], [0, 0, 0, 1, 1, 2], [0], [0]>} : vector<2x8x8xbf16>, vector<2x8x8xbf16>, vector<2x8x8xf32> -> vector<2x8x8xf32>
    %58 = vector.shape_cast %57 : vector<2x8x8xf32> to vector<16x8xf32>
    %59 = arith.truncf %58 : vector<16x8xf32> to vector<16x8xbf16>
    %c0_25 = arith.constant 0 : index
    %c0_26 = arith.constant 0 : index
    %c0_27 = arith.constant 0 : index
    %60 = vector.load %arg7[%c0_25, %c0_26, %c0_27] : memref<1x32x32xbf16, #tpu.memory_space<vmem>>, vector<1x8x32xbf16>
    %61 = vector.shape_cast %60 : vector<1x8x32xbf16> to vector<8x32xbf16>
    %cst_28 = arith.constant dense<0.000000e+00> : vector<16x32xf32>
    %62 = tpu.matmul %59, %61, %cst_28 {dimension_numbers = #tpu.dot_dimension_numbers<[1], [0], [0], [1], [0, 0, 1, 1], [], []>} : vector<16x8xbf16>, vector<8x32xbf16>, vector<16x32xf32> -> vector<16x32xf32>
    %63 = arith.addf %41, %62 : vector<16x32xf32>
    %64 = vector.extract_strided_slice %40 {offsets = [0, 0, 8], sizes = [2, 8, 8], strides = [1, 1, 1]} : vector<2x8x96xbf16> to vector<2x8x8xbf16>
    %65 = vector.extract_strided_slice %40 {offsets = [0, 0, 40], sizes = [2, 8, 8], strides = [1, 1, 1]} : vector<2x8x96xbf16> to vector<2x8x8xbf16>
    %66 = vector.extract_strided_slice %40 {offsets = [0, 0, 72], sizes = [2, 8, 8], strides = [1, 1, 1]} : vector<2x8x96xbf16> to vector<2x8x8xbf16>
    %cst_29 = arith.constant dense<0.000000e+00> : vector<2x8x8xf32>
    %67 = tpu.matmul %64, %65, %cst_29 {dimension_numbers = #tpu.dot_dimension_numbers<[2], [2], [1], [1], [0, 0, 0, 1, 1, 1], [0], [0]>} : vector<2x8x8xbf16>, vector<2x8x8xbf16>, vector<2x8x8xf32> -> vector<2x8x8xf32>
    %cst_30 = arith.constant dense<0xFF800000> : vector<2x8xf32>
    %68 = vector.multi_reduction <maximumf>, %67, %cst_30 [2] : vector<2x8x8xf32> to vector<2x8xf32>
    %69 = vector.shape_cast %68 : vector<2x8xf32> to vector<2x8x1xf32>
    %70 = vector.broadcast %69 : vector<2x8x1xf32> to vector<2x8x8xf32>
    %71 = arith.subf %67, %70 : vector<2x8x8xf32>
    %72 = math.exp %71 : vector<2x8x8xf32>
    %cst_31 = arith.constant dense<0.000000e+00> : vector<2x8xf32>
    %73 = vector.multi_reduction <add>, %72, %cst_31 [2] : vector<2x8x8xf32> to vector<2x8xf32>
    %74 = vector.shape_cast %73 : vector<2x8xf32> to vector<2x8x1xf32>
    %75 = tpu.reciprocal %74 {approx = true} : vector<2x8x1xf32> -> vector<2x8x1xf32>
    %76 = vector.broadcast %75 : vector<2x8x1xf32> to vector<2x8x8xf32>
    %77 = arith.mulf %72, %76 : vector<2x8x8xf32>
    %78 = arith.truncf %77 : vector<2x8x8xf32> to vector<2x8x8xbf16>
    %cst_32 = arith.constant dense<0.000000e+00> : vector<2x8x8xf32>
    %79 = tpu.matmul %78, %66, %cst_32 {dimension_numbers = #tpu.dot_dimension_numbers<[2], [1], [1], [2], [0, 0, 0, 1, 1, 2], [0], [0]>} : vector<2x8x8xbf16>, vector<2x8x8xbf16>, vector<2x8x8xf32> -> vector<2x8x8xf32>
    %80 = vector.shape_cast %79 : vector<2x8x8xf32> to vector<16x8xf32>
    %81 = arith.truncf %80 : vector<16x8xf32> to vector<16x8xbf16>
    %c0_33 = arith.constant 0 : index
    %c8 = arith.constant 8 : index
    %c0_34 = arith.constant 0 : index
    %82 = vector.load %arg7[%c0_33, %c8, %c0_34] : memref<1x32x32xbf16, #tpu.memory_space<vmem>>, vector<1x8x32xbf16>
    %83 = vector.shape_cast %82 : vector<1x8x32xbf16> to vector<8x32xbf16>
    %cst_35 = arith.constant dense<0.000000e+00> : vector<16x32xf32>
    %84 = tpu.matmul %81, %83, %cst_35 {dimension_numbers = #tpu.dot_dimension_numbers<[1], [0], [0], [1], [0, 0, 1, 1], [], []>} : vector<16x8xbf16>, vector<8x32xbf16>, vector<16x32xf32> -> vector<16x32xf32>
    %85 = arith.addf %63, %84 : vector<16x32xf32>
    %86 = vector.extract_strided_slice %40 {offsets = [0, 0, 16], sizes = [2, 8, 8], strides = [1, 1, 1]} : vector<2x8x96xbf16> to vector<2x8x8xbf16>
    %87 = vector.extract_strided_slice %40 {offsets = [0, 0, 48], sizes = [2, 8, 8], strides = [1, 1, 1]} : vector<2x8x96xbf16> to vector<2x8x8xbf16>
    %88 = vector.extract_strided_slice %40 {offsets = [0, 0, 80], sizes = [2, 8, 8], strides = [1, 1, 1]} : vector<2x8x96xbf16> to vector<2x8x8xbf16>
    %cst_36 = arith.constant dense<0.000000e+00> : vector<2x8x8xf32>
    %89 = tpu.matmul %86, %87, %cst_36 {dimension_numbers = #tpu.dot_dimension_numbers<[2], [2], [1], [1], [0, 0, 0, 1, 1, 1], [0], [0]>} : vector<2x8x8xbf16>, vector<2x8x8xbf16>, vector<2x8x8xf32> -> vector<2x8x8xf32>
    %cst_37 = arith.constant dense<0xFF800000> : vector<2x8xf32>
    %90 = vector.multi_reduction <maximumf>, %89, %cst_37 [2] : vector<2x8x8xf32> to vector<2x8xf32>
    %91 = vector.shape_cast %90 : vector<2x8xf32> to vector<2x8x1xf32>
    %92 = vector.broadcast %91 : vector<2x8x1xf32> to vector<2x8x8xf32>
    %93 = arith.subf %89, %92 : vector<2x8x8xf32>
    %94 = math.exp %93 : vector<2x8x8xf32>
    %cst_38 = arith.constant dense<0.000000e+00> : vector<2x8xf32>
    %95 = vector.multi_reduction <add>, %94, %cst_38 [2] : vector<2x8x8xf32> to vector<2x8xf32>
    %96 = vector.shape_cast %95 : vector<2x8xf32> to vector<2x8x1xf32>
    %97 = tpu.reciprocal %96 {approx = true} : vector<2x8x1xf32> -> vector<2x8x1xf32>
    %98 = vector.broadcast %97 : vector<2x8x1xf32> to vector<2x8x8xf32>
    %99 = arith.mulf %94, %98 : vector<2x8x8xf32>
    %100 = arith.truncf %99 : vector<2x8x8xf32> to vector<2x8x8xbf16>
    %cst_39 = arith.constant dense<0.000000e+00> : vector<2x8x8xf32>
    %101 = tpu.matmul %100, %88, %cst_39 {dimension_numbers = #tpu.dot_dimension_numbers<[2], [1], [1], [2], [0, 0, 0, 1, 1, 2], [0], [0]>} : vector<2x8x8xbf16>, vector<2x8x8xbf16>, vector<2x8x8xf32> -> vector<2x8x8xf32>
    %102 = vector.shape_cast %101 : vector<2x8x8xf32> to vector<16x8xf32>
    %103 = arith.truncf %102 : vector<16x8xf32> to vector<16x8xbf16>
    %c0_40 = arith.constant 0 : index
    %c16 = arith.constant 16 : index
    %c0_41 = arith.constant 0 : index
    %104 = vector.load %arg7[%c0_40, %c16, %c0_41] : memref<1x32x32xbf16, #tpu.memory_space<vmem>>, vector<1x8x32xbf16>
    %105 = vector.shape_cast %104 : vector<1x8x32xbf16> to vector<8x32xbf16>
    %cst_42 = arith.constant dense<0.000000e+00> : vector<16x32xf32>
    %106 = tpu.matmul %103, %105, %cst_42 {dimension_numbers = #tpu.dot_dimension_numbers<[1], [0], [0], [1], [0, 0, 1, 1], [], []>} : vector<16x8xbf16>, vector<8x32xbf16>, vector<16x32xf32> -> vector<16x32xf32>
    %107 = arith.addf %85, %106 : vector<16x32xf32>
    %108 = vector.extract_strided_slice %40 {offsets = [0, 0, 24], sizes = [2, 8, 8], strides = [1, 1, 1]} : vector<2x8x96xbf16> to vector<2x8x8xbf16>
    %109 = vector.extract_strided_slice %40 {offsets = [0, 0, 56], sizes = [2, 8, 8], strides = [1, 1, 1]} : vector<2x8x96xbf16> to vector<2x8x8xbf16>
    %110 = vector.extract_strided_slice %40 {offsets = [0, 0, 88], sizes = [2, 8, 8], strides = [1, 1, 1]} : vector<2x8x96xbf16> to vector<2x8x8xbf16>
    %cst_43 = arith.constant dense<0.000000e+00> : vector<2x8x8xf32>
    %111 = tpu.matmul %108, %109, %cst_43 {dimension_numbers = #tpu.dot_dimension_numbers<[2], [2], [1], [1], [0, 0, 0, 1, 1, 1], [0], [0]>} : vector<2x8x8xbf16>, vector<2x8x8xbf16>, vector<2x8x8xf32> -> vector<2x8x8xf32>
    %cst_44 = arith.constant dense<0xFF800000> : vector<2x8xf32>
    %112 = vector.multi_reduction <maximumf>, %111, %cst_44 [2] : vector<2x8x8xf32> to vector<2x8xf32>
    %113 = vector.shape_cast %112 : vector<2x8xf32> to vector<2x8x1xf32>
    %114 = vector.broadcast %113 : vector<2x8x1xf32> to vector<2x8x8xf32>
    %115 = arith.subf %111, %114 : vector<2x8x8xf32>
    %116 = math.exp %115 : vector<2x8x8xf32>
    %cst_45 = arith.constant dense<0.000000e+00> : vector<2x8xf32>
    %117 = vector.multi_reduction <add>, %116, %cst_45 [2] : vector<2x8x8xf32> to vector<2x8xf32>
    %118 = vector.shape_cast %117 : vector<2x8xf32> to vector<2x8x1xf32>
    %119 = tpu.reciprocal %118 {approx = true} : vector<2x8x1xf32> -> vector<2x8x1xf32>
    %120 = vector.broadcast %119 : vector<2x8x1xf32> to vector<2x8x8xf32>
    %121 = arith.mulf %116, %120 : vector<2x8x8xf32>
    %122 = arith.truncf %121 : vector<2x8x8xf32> to vector<2x8x8xbf16>
    %cst_46 = arith.constant dense<0.000000e+00> : vector<2x8x8xf32>
    %123 = tpu.matmul %122, %110, %cst_46 {dimension_numbers = #tpu.dot_dimension_numbers<[2], [1], [1], [2], [0, 0, 0, 1, 1, 2], [0], [0]>} : vector<2x8x8xbf16>, vector<2x8x8xbf16>, vector<2x8x8xf32> -> vector<2x8x8xf32>
    %124 = vector.shape_cast %123 : vector<2x8x8xf32> to vector<16x8xf32>
    %125 = arith.truncf %124 : vector<16x8xf32> to vector<16x8xbf16>
    %c0_47 = arith.constant 0 : index
    %c24 = arith.constant 24 : index
    %c0_48 = arith.constant 0 : index
    %126 = vector.load %arg7[%c0_47, %c24, %c0_48] : memref<1x32x32xbf16, #tpu.memory_space<vmem>>, vector<1x8x32xbf16>
    %127 = vector.shape_cast %126 : vector<1x8x32xbf16> to vector<8x32xbf16>
    %cst_49 = arith.constant dense<0.000000e+00> : vector<16x32xf32>
    %128 = tpu.matmul %125, %127, %cst_49 {dimension_numbers = #tpu.dot_dimension_numbers<[1], [0], [0], [1], [0, 0, 1, 1], [], []>} : vector<16x8xbf16>, vector<8x32xbf16>, vector<16x32xf32> -> vector<16x32xf32>
    %129 = arith.addf %107, %128 : vector<16x32xf32>
    %130 = arith.addf %4, %129 : vector<16x32xf32>
    %c0_50 = arith.constant 0 : index
    %c0_51 = arith.constant 0 : index
    %c0_52 = arith.constant 0 : index
    %131 = vector.load %arg8[%c0_50, %c0_51, %c0_52] : memref<1x1x32xf32, #tpu.memory_space<vmem>>, vector<1x1x32xf32>
    %132 = vector.shape_cast %131 : vector<1x1x32xf32> to vector<1x32xf32>
    %133 = vector.broadcast %132 : vector<1x32xf32> to vector<16x32xf32>
    %134 = arith.addf %130, %133 : vector<16x32xf32>
    %c0_53 = arith.constant 0 : index
    %c0_54 = arith.constant 0 : index
    %c0_55 = arith.constant 0 : index
    %135 = vector.load %arg9[%c0_53, %c0_54, %c0_55] : memref<1x1x32xf32, #tpu.memory_space<vmem>>, vector<1x1x32xf32>
    %136 = vector.shape_cast %135 : vector<1x1x32xf32> to vector<1x32xf32>
    %c0_56 = arith.constant 0 : index
    %c0_57 = arith.constant 0 : index
    %c0_58 = arith.constant 0 : index
    %137 = vector.load %arg10[%c0_56, %c0_57, %c0_58] : memref<1x1x32xf32, #tpu.memory_space<vmem>>, vector<1x1x32xf32>
    %138 = vector.shape_cast %137 : vector<1x1x32xf32> to vector<1x32xf32>
    %cst_59 = arith.constant dense<0.000000e+00> : vector<16xf32>
    %139 = vector.multi_reduction <add>, %134, %cst_59 [1] : vector<16x32xf32> to vector<16xf32>
    %140 = vector.shape_cast %139 : vector<16xf32> to vector<16x1xf32>
    %cst_60 = arith.constant 3.200000e+01 : f32
    %141 = vector.broadcast %cst_60 : f32 to vector<16x1xf32>
    %142 = arith.divf %140, %141 : vector<16x1xf32>
    %143 = vector.broadcast %142 : vector<16x1xf32> to vector<16x32xf32>
    %144 = arith.subf %134, %143 : vector<16x32xf32>
    %145 = arith.mulf %144, %144 : vector<16x32xf32>
    %cst_61 = arith.constant dense<0.000000e+00> : vector<16xf32>
    %146 = vector.multi_reduction <add>, %145, %cst_61 [1] : vector<16x32xf32> to vector<16xf32>
    %147 = vector.shape_cast %146 : vector<16xf32> to vector<16x1xf32>
    %cst_62 = arith.constant 3.200000e+01 : f32
    %148 = vector.broadcast %cst_62 : f32 to vector<16x1xf32>
    %149 = arith.divf %147, %148 : vector<16x1xf32>
    %150 = vector.broadcast %142 : vector<16x1xf32> to vector<16x32xf32>
    %151 = arith.subf %134, %150 : vector<16x32xf32>
    %cst_63 = arith.constant 9.99999974E-6 : f32
    %152 = vector.broadcast %cst_63 : f32 to vector<16x1xf32>
    %153 = arith.addf %149, %152 : vector<16x1xf32>
    %154 = math.rsqrt %153 : vector<16x1xf32>
    %155 = vector.broadcast %154 : vector<16x1xf32> to vector<16x32xf32>
    %156 = arith.mulf %151, %155 : vector<16x32xf32>
    %157 = vector.broadcast %136 : vector<1x32xf32> to vector<16x32xf32>
    %158 = arith.mulf %156, %157 : vector<16x32xf32>
    %159 = vector.broadcast %138 : vector<1x32xf32> to vector<16x32xf32>
    %160 = arith.addf %158, %159 : vector<16x32xf32>
    %161 = arith.truncf %160 : vector<16x32xf32> to vector<16x32xbf16>
    %c0_64 = arith.constant 0 : index
    %c0_65 = arith.constant 0 : index
    %c0_66 = arith.constant 0 : index
    %162 = vector.load %arg11[%c0_64, %c0_65, %c0_66] : memref<1x32x128xbf16, #tpu.memory_space<vmem>>, vector<1x32x128xbf16>
    %163 = vector.shape_cast %162 : vector<1x32x128xbf16> to vector<32x128xbf16>
    %cst_67 = arith.constant dense<0.000000e+00> : vector<16x128xf32>
    %164 = tpu.matmul %161, %163, %cst_67 {dimension_numbers = #tpu.dot_dimension_numbers<[1], [0], [0], [1], [0, 0, 1, 1], [], []>} : vector<16x32xbf16>, vector<32x128xbf16>, vector<16x128xf32> -> vector<16x128xf32>
    %c0_68 = arith.constant 0 : index
    %c0_69 = arith.constant 0 : index
    %c0_70 = arith.constant 0 : index
    %165 = vector.load %arg12[%c0_68, %c0_69, %c0_70] : memref<1x1x128xf32, #tpu.memory_space<vmem>>, vector<1x1x128xf32>
    %166 = vector.shape_cast %165 : vector<1x1x128xf32> to vector<1x128xf32>
    %167 = vector.broadcast %166 : vector<1x128xf32> to vector<16x128xf32>
    %168 = arith.addf %164, %167 : vector<16x128xf32>
    %cst_71 = arith.constant 1.702000e+00 : f32
    %169 = vector.broadcast %cst_71 : f32 to vector<16x128xf32>
    %170 = arith.mulf %169, %168 : vector<16x128xf32>
    %171 = arith.negf %170 : vector<16x128xf32>
    %172 = math.exp %171 : vector<16x128xf32>
    %cst_72 = arith.constant 1.000000e+00 : f32
    %173 = vector.broadcast %cst_72 : f32 to vector<16x128xf32>
    %174 = arith.addf %173, %172 : vector<16x128xf32>
    %175 = arith.divf %173, %174 : vector<16x128xf32>
    %176 = arith.mulf %168, %175 : vector<16x128xf32>
    %177 = arith.truncf %176 : vector<16x128xf32> to vector<16x128xbf16>
    %c0_73 = arith.constant 0 : index
    %c0_74 = arith.constant 0 : index
    %c0_75 = arith.constant 0 : index
    %178 = vector.load %arg13[%c0_73, %c0_74, %c0_75] : memref<1x128x32xbf16, #tpu.memory_space<vmem>>, vector<1x128x32xbf16>
    %179 = vector.shape_cast %178 : vector<1x128x32xbf16> to vector<128x32xbf16>
    %cst_76 = arith.constant dense<0.000000e+00> : vector<16x32xf32>
    %180 = tpu.matmul %177, %179, %cst_76 {dimension_numbers = #tpu.dot_dimension_numbers<[1], [0], [0], [1], [0, 0, 1, 1], [], []>} : vector<16x128xbf16>, vector<128x32xbf16>, vector<16x32xf32> -> vector<16x32xf32>
    %c0_77 = arith.constant 0 : index
    %c0_78 = arith.constant 0 : index
    %c0_79 = arith.constant 0 : index
    %181 = vector.load %arg14[%c0_77, %c0_78, %c0_79] : memref<1x1x32xf32, #tpu.memory_space<vmem>>, vector<1x1x32xf32>
    %182 = vector.shape_cast %181 : vector<1x1x32xf32> to vector<1x32xf32>
    %183 = vector.broadcast %182 : vector<1x32xf32> to vector<16x32xf32>
    %184 = arith.addf %180, %183 : vector<16x32xf32>
    %185 = arith.addf %134, %184 : vector<16x32xf32>
    %186 = vector.shape_cast %185 : vector<16x32xf32> to vector<2x8x32xf32>
    %c0_80 = arith.constant 0 : index
    %c0_81 = arith.constant 0 : index
    %c0_82 = arith.constant 0 : index
    %187 = vector.load %arg15[%c0_80, %c0_81, %c0_82] : memref<2x8x32xf32, #tpu.memory_space<vmem>>, vector<2x8x32xf32>
    tpu.vector_store %arg15[%c0_80, %c0_81, %c0_82], %186 {strides = array<i32>} : memref<2x8x32xf32, #tpu.memory_space<vmem>>, vector<2x8x32xf32>,
    return
  }
  func.func @transform_0(%arg0: i32, %arg1: i32) -> (i32, i32, i32) {
    %c0_i32 = arith.constant 0 : i32
    %c0_i32_0 = arith.constant 0 : i32
    %c0_i32_1 = arith.constant 0 : i32
    return %arg0, %c0_i32, %c0_i32_0 : i32, i32, i32
  }
  func.func @transform_1(%arg0: i32, %arg1: i32) -> (i32, i32, i32) {
    %c0_i32 = arith.constant 0 : i32
    %c0_i32_0 = arith.constant 0 : i32
    %c0_i32_1 = arith.constant 0 : i32
    return %arg1, %c0_i32, %c0_i32_0 : i32, i32, i32
  }
  func.func @transform_2(%arg0: i32, %arg1: i32) -> (i32, i32, i32) {
    %c0_i32 = arith.constant 0 : i32
    %c0_i32_0 = arith.constant 0 : i32
    %c0_i32_1 = arith.constant 0 : i32
    return %arg1, %c0_i32, %c0_i32_0 : i32, i32, i32
  }
  func.func @transform_3(%arg0: i32, %arg1: i32) -> (i32, i32, i32) {
    %c0_i32 = arith.constant 0 : i32
    %c0_i32_0 = arith.constant 0 : i32
    %c0_i32_1 = arith.constant 0 : i32
    return %arg1, %c0_i32, %c0_i32_0 : i32, i32, i32
  }
  func.func @transform_4(%arg0: i32, %arg1: i32) -> (i32, i32, i32) {
    %c0_i32 = arith.constant 0 : i32
    %c0_i32_0 = arith.constant 0 : i32
    %c0_i32_1 = arith.constant 0 : i32
    return %arg1, %c0_i32, %c0_i32_0 : i32, i32, i32
  }
  func.func @transform_5(%arg0: i32, %arg1: i32) -> (i32, i32, i32) {
    %c0_i32 = arith.constant 0 : i32
    %c0_i32_0 = arith.constant 0 : i32
    %c0_i32_1 = arith.constant 0 : i32
    return %arg1, %c0_i32, %c0_i32_0 : i32, i32, i32
  }
  func.func @transform_6(%arg0: i32, %arg1: i32) -> (i32, i32, i32) {
    %c0_i32 = arith.constant 0 : i32
    %c0_i32_0 = arith.constant 0 : i32
    %c0_i32_1 = arith.constant 0 : i32
    return %arg1, %c0_i32, %c0_i32_0 : i32, i32, i32
  }
  func.func @transform_7(%arg0: i32, %arg1: i32) -> (i32, i32, i32) {
    %c0_i32 = arith.constant 0 : i32
    %c0_i32_0 = arith.constant 0 : i32
    %c0_i32_1 = arith.constant 0 : i32
    return %arg1, %c0_i32, %c0_i32_0 : i32, i32, i32
  }
  func.func @transform_8(%arg0: i32, %arg1: i32) -> (i32, i32, i32) {
    %c0_i32 = arith.constant 0 : i32
    %c0_i32_0 = arith.constant 0 : i32
    %c0_i32_1 = arith.constant 0 : i32
    return %arg1, %c0_i32, %c0_i32_0 : i32, i32, i32
  }
  func.func @transform_9(%arg0: i32, %arg1: i32) -> (i32, i32, i32) {
    %c0_i32 = arith.constant 0 : i32
    %c0_i32_0 = arith.constant 0 : i32
    %c0_i32_1 = arith.constant 0 : i32
    return %arg1, %c0_i32, %c0_i32_0 : i32, i32, i32
  }
  func.func @transform_10(%arg0: i32, %arg1: i32) -> (i32, i32, i32) {
    %c0_i32 = arith.constant 0 : i32
    %c0_i32_0 = arith.constant 0 : i32
    %c0_i32_1 = arith.constant 0 : i32
    return %arg1, %c0_i32, %c0_i32_0 : i32, i32, i32
  }
  func.func @transform_11(%arg0: i32, %arg1: i32) -> (i32, i32, i32) {
    %c0_i32 = arith.constant 0 : i32
    %c0_i32_0 = arith.constant 0 : i32
    %c0_i32_1 = arith.constant 0 : i32
    return %arg1, %c0_i32, %c0_i32_0 : i32, i32, i32
  }
  func.func @transform_12(%arg0: i32, %arg1: i32) -> (i32, i32, i32) {
    %c0_i32 = arith.constant 0 : i32
    %c0_i32_0 = arith.constant 0 : i32
    %c0_i32_1 = arith.constant 0 : i32
    return %arg1, %c0_i32, %c0_i32_0 : i32, i32, i32
  }
  func.func @transform_13(%arg0: i32, %arg1: i32) -> (i32, i32, i32) {
    %c0_i32 = arith.constant 0 : i32
    %c0_i32_0 = arith.constant 0 : i32
    %c0_i32_1 = arith.constant 0 : i32
    return %arg0, %c0_i32, %c0_i32_0 : i32, i32, i32
  }
}

</mosaic_0001>

<llo_original>
// kernel: transformer_forward.1
$region0: #{transformer_forward.1}
  #allocation0 [shape = 'u32[]', space=smem, size = 0x4, offset = 0x4, fixed_abs, tag = 'smem constant byte address 0x4 - core index']
  #allocation1 [shape = 'u32[144,128]{1,0:T(1,128)}', space=vmem, size = 0x12000, scoped, tag = 'internal scratch']
  %s0 = inlined_call_operand.vmem [shape: f32[2,8,32], index: 0, kind: input, shape index: {}, may-alias: {0,13}]
  %s1 = inlined_call_operand.vmem [shape: f32[2,1,32], index: 1, kind: input, shape index: {}]
  %s2 = inlined_call_operand.vmem [shape: f32[2,1,32], index: 2, kind: input, shape index: {}]
  %s3 = inlined_call_operand.vmem [shape: bf16[2,32,96], index: 3, kind: input, shape index: {}]
  %s4 = inlined_call_operand.vmem [shape: f32[2,1,96], index: 4, kind: input, shape index: {}]
  %s5 = inlined_call_operand.vmem [shape: bf16[2,32,32], index: 5, kind: input, shape index: {}]
  %s6 = inlined_call_operand.vmem [shape: f32[2,1,32], index: 6, kind: input, shape index: {}]
  %s7 = inlined_call_operand.vmem [shape: f32[2,1,32], index: 7, kind: input, shape index: {}]
  %s8 = inlined_call_operand.vmem [shape: f32[2,1,32], index: 8, kind: input, shape index: {}]
  %s9 = inlined_call_operand.vmem [shape: bf16[2,32,128], index: 9, kind: input, shape index: {}]
  %s10 = inlined_call_operand.vmem [shape: f32[2,1,128], index: 10, kind: input, shape index: {}]
  %s11 = inlined_call_operand.vmem [shape: bf16[2,128,32], index: 11, kind: input, shape index: {}]
  %s12 = inlined_call_operand.vmem [shape: f32[2,1,32], index: 12, kind: input, shape index: {}]
  %s13 = inlined_call_operand.vmem [shape: f32[2,8,32], index: 13, kind: output, shape index: {}, may-alias: {0,13}]
  %s14 = sld [smem:[#allocation0]]
  $region89: #{transformer_forward.1} parent=0
    _
  %s16 = ssub.s32 1, %s14
  %s17 = scalar_select 0, %s16, %s14
  loop: start=0, step=1, limit=4
  $region2: #{transformer_forward.1} parent=0 // loop_pre_header
    _
  $region3: #{transformer_forward.1} parent=0 // loop_header
    %s19 = sphi 0, %s23
    %p20 = scmp.ge.s32.totalorder %s19, 4
    %s26 = sphi 0, %s38
    %s27 = sphi 0, %s34
    %s28 = sphi 0, %s26
    %s29 = sphi 0, %s27
    %s30 = sphi 0, %s28
    %s31 = sphi 0, %s29
    %s41 = sphi 0, %s43
    %s44 = sphi 0, %s41
    %s45 = sphi 0, %s44
    %s61 = sphi 0, %s45
    %s67 = sphi 0, %s69
    %s70 = sphi 0, %s67
    %s71 = sphi 0, %s70
    %s87 = sphi 0, %s71
    %s93 = sphi 0, %s95
    %s96 = sphi 0, %s93
    %s97 = sphi 0, %s96
    %s113 = sphi 0, %s97
    %s119 = sphi 0, %s121
    %s122 = sphi 0, %s119
    %s123 = sphi 0, %s122
    %s139 = sphi 0, %s123
    %s145 = sphi 0, %s147
    %s148 = sphi 0, %s145
    %s149 = sphi 0, %s148
    %s165 = sphi 0, %s149
    %s171 = sphi 0, %s173
    %s174 = sphi 0, %s171
    %s175 = sphi 0, %s174
    %s191 = sphi 0, %s175
    %s197 = sphi 0, %s199
    %s200 = sphi 0, %s197
    %s201 = sphi 0, %s200
    %s217 = sphi 0, %s201
    %s223 = sphi 0, %s225
    %s226 = sphi 0, %s223
    %s227 = sphi 0, %s226
    %s243 = sphi 0, %s227
    %s249 = sphi 0, %s251
    %s252 = sphi 0, %s249
    %s253 = sphi 0, %s252
    %s269 = sphi 0, %s253
    %s275 = sphi 0, %s277
    %s278 = sphi 0, %s275
    %s279 = sphi 0, %s278
    %s295 = sphi 0, %s279
    %s301 = sphi 0, %s303
    %s304 = sphi 0, %s301
    %s305 = sphi 0, %s304
    %s321 = sphi 0, %s305
    %s327 = sphi 0, %s329
    %s330 = sphi 0, %s327
    %s331 = sphi 0, %s330
    %s347 = sphi 0, %s331
    %s353 = sphi 0, %s355
    %s356 = sphi 0, %s353
    %s357 = sphi 0, %s356
    %s373 = sphi 0, %s357
    %s379 = sphi 0, %s381
    %s382 = sphi 0, %s379
    %s383 = sphi 0, %s382
    %s399 = sphi 0, %s383
  $region4: #{transformer_forward.1} parent=0 // loop_header_branch
    %22 = sbr.rel (%p20) target = $region8
  $region5: #{transformer_forward.1} parent=0 // loop_body
    %s24 = ssub.s32 %s19, 1
    %s25 = ssub.s32 %s19, 2
    %s32 = sadd.s32 1, %s27
    %p33 = scmp.ge.s32.totalorder %s32, 2
    %s34 = scalar_select %p33, 0, %s32
    %s35 = sadd.s32 1, %s26
    %s36 = scalar_select %p33, %s35, %s26
    %p37 = scmp.ge.s32.totalorder %s36, 1
    %s38 = scalar_select %p37, 0, %s36
    %s39 = ssub.s32 %s26, %s38
    %p40 = scmp.eq.s32.totalorder %s39, 0
    %s42 = sadd.s32 %s41, 1
    %s43 = scalar_select %p40, %s41, %s42
    %p46 = pneg %p40
    %p47 = scmp.eq.s32.totalorder %s19, 1
    %p48 = por %p46, %p47
    %p49 = scmp.ne.s32.totalorder %s41, %s44
    %p50 = scmp.eq.s32.totalorder %s19, 0
    %p51 = por %p49, %p50
    %p52 = scmp.ne.s32.totalorder %s41, %s44
    %p53 = scmp.eq.s32.totalorder %s24, 1
    %p54 = por %p52, %p53
    %p55 = scmp.ne.s32.totalorder %s44, %s45
    %p56 = scmp.eq.s32.totalorder %s24, 0
    %p57 = por %p55, %p56
    %p58 = scmp.ne.s32.totalorder %s44, %s45
    %p59 = scmp.eq.s32.totalorder %s25, 1
    %p60 = por %p58, %p59
    %p62 = scmp.ne.s32.totalorder %s45, %s61
    %p63 = scmp.eq.s32.totalorder %s25, 0
    %p64 = por %p62, %p63
    %s65 = ssub.s32 %s27, %s34
    %p66 = scmp.eq.s32.totalorder %s65, 0
    %s68 = sadd.s32 %s67, 1
    %s69 = scalar_select %p66, %s67, %s68
    %p72 = pneg %p66
    %p73 = scmp.eq.s32.totalorder %s19, 1
    %p74 = por %p72, %p73
    %p75 = scmp.ne.s32.totalorder %s67, %s70
    %p76 = scmp.eq.s32.totalorder %s19, 0
    %p77 = por %p75, %p76
    %p78 = scmp.ne.s32.totalorder %s67, %s70
    %p79 = scmp.eq.s32.totalorder %s24, 1
    %p80 = por %p78, %p79
    %p81 = scmp.ne.s32.totalorder %s70, %s71
    %p82 = scmp.eq.s32.totalorder %s24, 0
    %p83 = por %p81, %p82
    %p84 = scmp.ne.s32.totalorder %s70, %s71
    %p85 = scmp.eq.s32.totalorder %s25, 1
    %p86 = por %p84, %p85
    %p88 = scmp.ne.s32.totalorder %s71, %s87
    %p89 = scmp.eq.s32.totalorder %s25, 0
    %p90 = por %p88, %p89
    %s91 = ssub.s32 %s27, %s34
    %p92 = scmp.eq.s32.totalorder %s91, 0
    %s94 = sadd.s32 %s93, 1
    %s95 = scalar_select %p92, %s93, %s94
    %p98 = pneg %p92
    %p99 = scmp.eq.s32.totalorder %s19, 1
    %p100 = por %p98, %p99
    %p101 = scmp.ne.s32.totalorder %s93, %s96
    %p102 = scmp.eq.s32.totalorder %s19, 0
    %p103 = por %p101, %p102
    %p104 = scmp.ne.s32.totalorder %s93, %s96
    %p105 = scmp.eq.s32.totalorder %s24, 1
    %p106 = por %p104, %p105
    %p107 = scmp.ne.s32.totalorder %s96, %s97
    %p108 = scmp.eq.s32.totalorder %s24, 0
    %p109 = por %p107, %p108
    %p110 = scmp.ne.s32.totalorder %s96, %s97
    %p111 = scmp.eq.s32.totalorder %s25, 1
    %p112 = por %p110, %p111
    %p114 = scmp.ne.s32.totalorder %s97, %s113
    %p115 = scmp.eq.s32.totalorder %s25, 0
    %p116 = por %p114, %p115
    %s117 = ssub.s32 %s27, %s34
    %p118 = scmp.eq.s32.totalorder %s117, 0
    %s120 = sadd.s32 %s119, 1
    %s121 = scalar_select %p118, %s119, %s120
    %p124 = pneg %p118
    %p125 = scmp.eq.s32.totalorder %s19, 1
    %p126 = por %p124, %p125
    %p127 = scmp.ne.s32.totalorder %s119, %s122
    %p128 = scmp.eq.s32.totalorder %s19, 0
    %p129 = por %p127, %p128
    %p130 = scmp.ne.s32.totalorder %s119, %s122
    %p131 = scmp.eq.s32.totalorder %s24, 1
    %p132 = por %p130, %p131
    %p133 = scmp.ne.s32.totalorder %s122, %s123
    %p134 = scmp.eq.s32.totalorder %s24, 0
    %p135 = por %p133, %p134
    %p136 = scmp.ne.s32.totalorder %s122, %s123
    %p137 = scmp.eq.s32.totalorder %s25, 1
    %p138 = por %p136, %p137
    %p140 = scmp.ne.s32.totalorder %s123, %s139
    %p141 = scmp.eq.s32.totalorder %s25, 0
    %p142 = por %p140, %p141
    %s143 = ssub.s32 %s27, %s34
    %p144 = scmp.eq.s32.totalorder %s143, 0
    %s146 = sadd.s32 %s145, 1
    %s147 = scalar_select %p144, %s145, %s146
    %p150 = pneg %p144
    %p151 = scmp.eq.s32.totalorder %s19, 1
    %p152 = por %p150, %p151
    %p153 = scmp.ne.s32.totalorder %s145, %s148
    %p154 = scmp.eq.s32.totalorder %s19, 0
    %p155 = por %p153, %p154
    %p156 = scmp.ne.s32.totalorder %s145, %s148
    %p157 = scmp.eq.s32.totalorder %s24, 1
    %p158 = por %p156, %p157
    %p159 = scmp.ne.s32.totalorder %s148, %s149
    %p160 = scmp.eq.s32.totalorder %s24, 0
    %p161 = por %p159, %p160
    %p162 = scmp.ne.s32.totalorder %s148, %s149
    %p163 = scmp.eq.s32.totalorder %s25, 1
    %p164 = por %p162, %p163
    %p166 = scmp.ne.s32.totalorder %s149, %s165
    %p167 = scmp.eq.s32.totalorder %s25, 0
    %p168 = por %p166, %p167
    %s169 = ssub.s32 %s27, %s34
    %p170 = scmp.eq.s32.totalorder %s169, 0
    %s172 = sadd.s32 %s171, 1
    %s173 = scalar_select %p170, %s171, %s172
    %p176 = pneg %p170
    %p177 = scmp.eq.s32.totalorder %s19, 1
    %p178 = por %p176, %p177
    %p179 = scmp.ne.s32.totalorder %s171, %s174
    %p180 = scmp.eq.s32.totalorder %s19, 0
    %p181 = por %p179, %p180
    %p182 = scmp.ne.s32.totalorder %s171, %s174
    %p183 = scmp.eq.s32.totalorder %s24, 1
    %p184 = por %p182, %p183
    %p185 = scmp.ne.s32.totalorder %s174, %s175
    %p186 = scmp.eq.s32.totalorder %s24, 0
    %p187 = por %p185, %p186
    %p188 = scmp.ne.s32.totalorder %s174, %s175
    %p189 = scmp.eq.s32.totalorder %s25, 1
    %p190 = por %p188, %p189
    %p192 = scmp.ne.s32.totalorder %s175, %s191
    %p193 = scmp.eq.s32.totalorder %s25, 0
    %p194 = por %p192, %p193
    %s195 = ssub.s32 %s27, %s34
    %p196 = scmp.eq.s32.totalorder %s195, 0
    %s198 = sadd.s32 %s197, 1
    %s199 = scalar_select %p196, %s197, %s198
    %p202 = pneg %p196
    %p203 = scmp.eq.s32.totalorder %s19, 1
    %p204 = por %p202, %p203
    %p205 = scmp.ne.s32.totalorder %s197, %s200
    %p206 = scmp.eq.s32.totalorder %s19, 0
    %p207 = por %p205, %p206
    %p208 = scmp.ne.s32.totalorder %s197, %s200
    %p209 = scmp.eq.s32.totalorder %s24, 1
    %p210 = por %p208, %p209
    %p211 = scmp.ne.s32.totalorder %s200, %s201
    %p212 = scmp.eq.s32.totalorder %s24, 0
    %p213 = por %p211, %p212
    %p214 = scmp.ne.s32.totalorder %s200, %s201
    %p215 = scmp.eq.s32.totalorder %s25, 1
    %p216 = por %p214, %p215
    %p218 = scmp.ne.s32.totalorder %s201, %s217
    %p219 = scmp.eq.s32.totalorder %s25, 0
    %p220 = por %p218, %p219
    %s221 = ssub.s32 %s27, %s34
    %p222 = scmp.eq.s32.totalorder %s221, 0
    %s224 = sadd.s32 %s223, 1
    %s225 = scalar_select %p222, %s223, %s224
    %p228 = pneg %p222
    %p229 = scmp.eq.s32.totalorder %s19, 1
    %p230 = por %p228, %p229
    %p231 = scmp.ne.s32.totalorder %s223, %s226
    %p232 = scmp.eq.s32.totalorder %s19, 0
    %p233 = por %p231, %p232
    %p234 = scmp.ne.s32.totalorder %s223, %s226
    %p235 = scmp.eq.s32.totalorder %s24, 1
    %p236 = por %p234, %p235
    %p237 = scmp.ne.s32.totalorder %s226, %s227
    %p238 = scmp.eq.s32.totalorder %s24, 0
    %p239 = por %p237, %p238
    %p240 = scmp.ne.s32.totalorder %s226, %s227
    %p241 = scmp.eq.s32.totalorder %s25, 1
    %p242 = por %p240, %p241
    %p244 = scmp.ne.s32.totalorder %s227, %s243
    %p245 = scmp.eq.s32.totalorder %s25, 0
    %p246 = por %p244, %p245
    %s247 = ssub.s32 %s27, %s34
    %p248 = scmp.eq.s32.totalorder %s247, 0
    %s250 = sadd.s32 %s249, 1
    %s251 = scalar_select %p248, %s249, %s250
    %p254 = pneg %p248
    %p255 = scmp.eq.s32.totalorder %s19, 1
    %p256 = por %p254, %p255
    %p257 = scmp.ne.s32.totalorder %s249, %s252
    %p258 = scmp.eq.s32.totalorder %s19, 0
    %p259 = por %p257, %p258
    %p260 = scmp.ne.s32.totalorder %s249, %s252
    %p261 = scmp.eq.s32.totalorder %s24, 1
    %p262 = por %p260, %p261
    %p263 = scmp.ne.s32.totalorder %s252, %s253
    %p264 = scmp.eq.s32.totalorder %s24, 0
    %p265 = por %p263, %p264
    %p266 = scmp.ne.s32.totalorder %s252, %s253
    %p267 = scmp.eq.s32.totalorder %s25, 1
    %p268 = por %p266, %p267
    %p270 = scmp.ne.s32.totalorder %s253, %s269
    %p271 = scmp.eq.s32.totalorder %s25, 0
    %p272 = por %p270, %p271
    %s273 = ssub.s32 %s27, %s34
    %p274 = scmp.eq.s32.totalorder %s273, 0
    %s276 = sadd.s32 %s275, 1
    %s277 = scalar_select %p274, %s275, %s276
    %p280 = pneg %p274
    %p281 = scmp.eq.s32.totalorder %s19, 1
    %p282 = por %p280, %p281
    %p283 = scmp.ne.s32.totalorder %s275, %s278
    %p284 = scmp.eq.s32.totalorder %s19, 0
    %p285 = por %p283, %p284
    %p286 = scmp.ne.s32.totalorder %s275, %s278
    %p287 = scmp.eq.s32.totalorder %s24, 1
    %p288 = por %p286, %p287
    %p289 = scmp.ne.s32.totalorder %s278, %s279
    %p290 = scmp.eq.s32.totalorder %s24, 0
    %p291 = por %p289, %p290
    %p292 = scmp.ne.s32.totalorder %s278, %s279
    %p293 = scmp.eq.s32.totalorder %s25, 1
    %p294 = por %p292, %p293
    %p296 = scmp.ne.s32.totalorder %s279, %s295
    %p297 = scmp.eq.s32.totalorder %s25, 0
    %p298 = por %p296, %p297
    %s299 = ssub.s32 %s27, %s34
    %p300 = scmp.eq.s32.totalorder %s299, 0
    %s302 = sadd.s32 %s301, 1
    %s303 = scalar_select %p300, %s301, %s302
    %p306 = pneg %p300
    %p307 = scmp.eq.s32.totalorder %s19, 1
    %p308 = por %p306, %p307
    %p309 = scmp.ne.s32.totalorder %s301, %s304
    %p310 = scmp.eq.s32.totalorder %s19, 0
    %p311 = por %p309, %p310
    %p312 = scmp.ne.s32.totalorder %s301, %s304
    %p313 = scmp.eq.s32.totalorder %s24, 1
    %p314 = por %p312, %p313
    %p315 = scmp.ne.s32.totalorder %s304, %s305
    %p316 = scmp.eq.s32.totalorder %s24, 0
    %p317 = por %p315, %p316
    %p318 = scmp.ne.s32.totalorder %s304, %s305
    %p319 = scmp.eq.s32.totalorder %s25, 1
    %p320 = por %p318, %p319
    %p322 = scmp.ne.s32.totalorder %s305, %s321
    %p323 = scmp.eq.s32.totalorder %s25, 0
    %p324 = por %p322, %p323
    %s325 = ssub.s32 %s27, %s34
    %p326 = scmp.eq.s32.totalorder %s325, 0
    %s328 = sadd.s32 %s327, 1
    %s329 = scalar_select %p326, %s327, %s328
    %p332 = pneg %p326
    %p333 = scmp.eq.s32.totalorder %s19, 1
    %p334 = por %p332, %p333
    %p335 = scmp.ne.s32.totalorder %s327, %s330
    %p336 = scmp.eq.s32.totalorder %s19, 0
    %p337 = por %p335, %p336
    %p338 = scmp.ne.s32.totalorder %s327, %s330
    %p339 = scmp.eq.s32.totalorder %s24, 1
    %p340 = por %p338, %p339
    %p341 = scmp.ne.s32.totalorder %s330, %s331
    %p342 = scmp.eq.s32.totalorder %s24, 0
    %p343 = por %p341, %p342
    %p344 = scmp.ne.s32.totalorder %s330, %s331
    %p345 = scmp.eq.s32.totalorder %s25, 1
    %p346 = por %p344, %p345
    %p348 = scmp.ne.s32.totalorder %s331, %s347
    %p349 = scmp.eq.s32.totalorder %s25, 0
    %p350 = por %p348, %p349
    %s351 = ssub.s32 %s27, %s34
    %p352 = scmp.eq.s32.totalorder %s351, 0
    %s354 = sadd.s32 %s353, 1
    %s355 = scalar_select %p352, %s353, %s354
    %p358 = pneg %p352
    %p359 = scmp.eq.s32.totalorder %s19, 1
    %p360 = por %p358, %p359
    %p361 = scmp.ne.s32.totalorder %s353, %s356
    %p362 = scmp.eq.s32.totalorder %s19, 0
    %p363 = por %p361, %p362
    %p364 = scmp.ne.s32.totalorder %s353, %s356
    %p365 = scmp.eq.s32.totalorder %s24, 1
    %p366 = por %p364, %p365
    %p367 = scmp.ne.s32.totalorder %s356, %s357
    %p368 = scmp.eq.s32.totalorder %s24, 0
    %p369 = por %p367, %p368
    %p370 = scmp.ne.s32.totalorder %s356, %s357
    %p371 = scmp.eq.s32.totalorder %s25, 1
    %p372 = por %p370, %p371
    %p374 = scmp.ne.s32.totalorder %s357, %s373
    %p375 = scmp.eq.s32.totalorder %s25, 0
    %p376 = por %p374, %p375
    %s377 = ssub.s32 %s26, %s38
    %p378 = scmp.eq.s32.totalorder %s377, 0
    %s380 = sadd.s32 %s379, 1
    %s381 = scalar_select %p378, %s379, %s380
    %p384 = pneg %p378
    %p385 = scmp.eq.s32.totalorder %s19, 1
    %p386 = por %p384, %p385
    %p387 = scmp.ne.s32.totalorder %s379, %s382
    %p388 = scmp.eq.s32.totalorder %s19, 0
    %p389 = por %p387, %p388
    %p390 = scmp.ne.s32.totalorder %s379, %s382
    %p391 = scmp.eq.s32.totalorder %s24, 1
    %p392 = por %p390, %p391
    %p393 = scmp.ne.s32.totalorder %s382, %s383
    %p394 = scmp.eq.s32.totalorder %s24, 0
    %p395 = por %p393, %p394
    %p396 = scmp.ne.s32.totalorder %s382, %s383
    %p397 = scmp.eq.s32.totalorder %s25, 1
    %p398 = por %p396, %p397
    %p400 = scmp.ne.s32.totalorder %s383, %s399
    %p401 = scmp.eq.s32.totalorder %s25, 0
    %p402 = por %p400, %p401
    %p403 = scmp.le.s32.totalorder 1, %s19
    %p404 = scmp.lt.s32.totalorder %s19, 3
    %p405 = pnand %p403, %p404
    %p406 = pneg %p405
    // Predicated region
    $region9: #{transformer_forward.1} parent=5 // pred_check
      _
    $region10: #{transformer_forward.1} parent=5 // pred_check_branch
      %408 = sbr.rel (%p405) target = $region12
    $region11: #{transformer_forward.1} parent=5 // pred_region
      %s409 = ssub.s32 %s19, 1
      // Predicated region
      $region13: #{transformer_forward.1} parent=11 // pred_check
        %p410 = pneg %p57
      $region14: #{transformer_forward.1} parent=11 // pred_check_branch
        %412 = sbr.rel (%p410) target = $region16
      $region15: #{transformer_forward.1} parent=11 // pred_region
        %s413 = smul.u32 2, %s28
        %p414 = scmp.lt.s32.totalorder %s413, 1
        %s415 = scalar_select %p414, %s413, 1
        %s416 = smul.addr %s415, 8
        %s417 = scalar_lea.vmem %s0, %s416
        %s418 = smul.u32 2, %s28
      $region16: #{transformer_forward.1} parent=11 // pred_fallthru
        _
    $region12: #{transformer_forward.1} parent=5 // pred_fallthru
      _
    %p419 = scmp.lt.s32.totalorder %s19, 2
    // Predicated region
    $region17: #{transformer_forward.1} parent=5 // pred_check
      %p420 = pneg %p419
    $region18: #{transformer_forward.1} parent=5 // pred_check_branch
      %422 = sbr.rel (%p420) target = $region20
    $region19: #{transformer_forward.1} parent=5 // pred_region
      // Predicated region
      $region21: #{transformer_forward.1} parent=19 // pred_check
        %p423 = pneg %p77
      $region22: #{transformer_forward.1} parent=19 // pred_check_branch
        %425 = sbr.rel (%p423) target = $region24
      $region23: #{transformer_forward.1} parent=19 // pred_region
        %p426 = scmp.lt.s32.totalorder %s27, 1
        %s427 = scalar_select %p426, %s27, 1
        %s428 = scalar_lea.vmem %s1, %s427
      $region24: #{transformer_forward.1} parent=19 // pred_fallthru
        _
      // Predicated region
      $region25: #{transformer_forward.1} parent=19 // pred_check
        %p429 = pneg %p103
      $region26: #{transformer_forward.1} parent=19 // pred_check_branch
        %431 = sbr.rel (%p429) target = $region28
      $region27: #{transformer_forward.1} parent=19 // pred_region
        %p432 = scmp.lt.s32.totalorder %s27, 1
        %s433 = scalar_select %p432, %s27, 1
        %s434 = scalar_lea.vmem %s2, %s433
      $region28: #{transformer_forward.1} parent=19 // pred_fallthru
        _
      // Predicated region
      $region29: #{transformer_forward.1} parent=19 // pred_check
        %p435 = pneg %p129
      $region30: #{transformer_forward.1} parent=19 // pred_check_branch
        %437 = sbr.rel (%p435) target = $region32
      $region31: #{transformer_forward.1} parent=19 // pred_region
        %p438 = scmp.lt.s32.totalorder %s27, 1
        %s439 = scalar_select %p438, %s27, 1
        %s440 = smul.addr %s439, 4
        %s441 = smul.addr %s440, 4
        %s442 = scalar_lea.vmem %s3, %s441
      $region32: #{transformer_forward.1} parent=19 // pred_fallthru
        _
      // Predicated region
      $region33: #{transformer_forward.1} parent=19 // pred_check
        %p443 = pneg %p155
      $region34: #{transformer_forward.1} parent=19 // pred_check_branch
        %445 = sbr.rel (%p443) target = $region36
      $region35: #{transformer_forward.1} parent=19 // pred_region
        %p446 = scmp.lt.s32.totalorder %s27, 1
        %s447 = scalar_select %p446, %s27, 1
        %s448 = scalar_lea.vmem %s4, %s447
      $region36: #{transformer_forward.1} parent=19 // pred_fallthru
        _
      // Predicated region
      $region37: #{transformer_forward.1} parent=19 // pred_check
        %p449 = pneg %p181
      $region38: #{transformer_forward.1} parent=19 // pred_check_branch
        %451 = sbr.rel (%p449) target = $region40
      $region39: #{transformer_forward.1} parent=19 // pred_region
        %p452 = scmp.lt.s32.totalorder %s27, 1
        %s453 = scalar_select %p452, %s27, 1
        %s454 = smul.addr %s453, 4
        %s455 = smul.addr %s454, 4
        %s456 = scalar_lea.vmem %s5, %s455
      $region40: #{transformer_forward.1} parent=19 // pred_fallthru
        _
      // Predicated region
      $region41: #{transformer_forward.1} parent=19 // pred_check
        %p457 = pneg %p207
      $region42: #{transformer_forward.1} parent=19 // pred_check_branch
        %459 = sbr.rel (%p457) target = $region44
      $region43: #{transformer_forward.1} parent=19 // pred_region
        %p460 = scmp.lt.s32.totalorder %s27, 1
        %s461 = scalar_select %p460, %s27, 1
        %s462 = scalar_lea.vmem %s6, %s461
      $region44: #{transformer_forward.1} parent=19 // pred_fallthru
        _
      // Predicated region
      $region45: #{transformer_forward.1} parent=19 // pred_check
        %p463 = pneg %p233
      $region46: #{transformer_forward.1} parent=19 // pred_check_branch
        %465 = sbr.rel (%p463) target = $region48
      $region47: #{transformer_forward.1} parent=19 // pred_region
        %p466 = scmp.lt.s32.totalorder %s27, 1
        %s467 = scalar_select %p466, %s27, 1
        %s468 = scalar_lea.vmem %s7, %s467
      $region48: #{transformer_forward.1} parent=19 // pred_fallthru
        _
      // Predicated region
      $region49: #{transformer_forward.1} parent=19 // pred_check
        %p469 = pneg %p259
      $region50: #{transformer_forward.1} parent=19 // pred_check_branch
        %471 = sbr.rel (%p469) target = $region52
      $region51: #{transformer_forward.1} parent=19 // pred_region
        %p472 = scmp.lt.s32.totalorder %s27, 1
        %s473 = scalar_select %p472, %s27, 1
        %s474 = scalar_lea.vmem %s8, %s473
      $region52: #{transformer_forward.1} parent=19 // pred_fallthru
        _
      // Predicated region
      $region53: #{transformer_forward.1} parent=19 // pred_check
        %p475 = pneg %p285
      $region54: #{transformer_forward.1} parent=19 // pred_check_branch
        %477 = sbr.rel (%p475) target = $region56
      $region55: #{transformer_forward.1} parent=19 // pred_region
        %p478 = scmp.lt.s32.totalorder %s27, 1
        %s479 = scalar_select %p478, %s27, 1
        %s480 = smul.addr %s479, 4
        %s481 = smul.addr %s480, 4
        %s482 = scalar_lea.vmem %s9, %s481
      $region56: #{transformer_forward.1} parent=19 // pred_fallthru
        _
      // Predicated region
      $region57: #{transformer_forward.1} parent=19 // pred_check
        %p483 = pneg %p311
      $region58: #{transformer_forward.1} parent=19 // pred_check_branch
        %485 = sbr.rel (%p483) target = $region60
      $region59: #{transformer_forward.1} parent=19 // pred_region
        %p486 = scmp.lt.s32.totalorder %s27, 1
        %s487 = scalar_select %p486, %s27, 1
        %s488 = scalar_lea.vmem %s10, %s487
      $region60: #{transformer_forward.1} parent=19 // pred_fallthru
        _
      // Predicated region
      $region61: #{transformer_forward.1} parent=19 // pred_check
        %p489 = pneg %p337
      $region62: #{transformer_forward.1} parent=19 // pred_check_branch
        %491 = sbr.rel (%p489) target = $region64
      $region63: #{transformer_forward.1} parent=19 // pred_region
        %p492 = scmp.lt.s32.totalorder %s27, 1
        %s493 = scalar_select %p492, %s27, 1
        %s494 = smul.addr %s493, 16
        %s495 = smul.addr %s494, 4
        %s496 = scalar_lea.vmem %s11, %s495
      $region64: #{transformer_forward.1} parent=19 // pred_fallthru
        _
      // Predicated region
      $region65: #{transformer_forward.1} parent=19 // pred_check
        %p497 = pneg %p363
      $region66: #{transformer_forward.1} parent=19 // pred_check_branch
        %499 = sbr.rel (%p497) target = $region68
      $region67: #{transformer_forward.1} parent=19 // pred_region
        %p500 = scmp.lt.s32.totalorder %s27, 1
        %s501 = scalar_select %p500, %s27, 1
        %s502 = scalar_lea.vmem %s12, %s501
      $region68: #{transformer_forward.1} parent=19 // pred_fallthru
        _
    $region20: #{transformer_forward.1} parent=5 // pred_fallthru
      _
    %p503 = scmp.le.s32.totalorder 1, %s19
    %p504 = scmp.lt.s32.totalorder %s19, 3
    %p505 = pnand %p503, %p504
    %p506 = pneg %p505
    // Predicated region
    $region69: #{transformer_forward.1} parent=5 // pred_check
      _
    $region70: #{transformer_forward.1} parent=5 // pred_check_branch
      %508 = sbr.rel (%p505) target = $region72
    $region71: #{transformer_forward.1} parent=5 // pred_region
      %s509 = ssub.s32 %s19, 1
      %s510 = smul.u32 2, %s28
      %p511 = scmp.lt.s32.totalorder %s510, 1
      %s512 = scalar_select %p511, %s510, 1
      %s513 = smul.addr %s512, 8
      %s514 = scalar_lea.vmem %s0, %s513
      %p515 = pneg %p57
      %p516 = pneg %p54
      %p517 = scmp.lt.s32.totalorder %s29, 1
      %s518 = scalar_select %p517, %s29, 1
      %s519 = scalar_lea.vmem %s1, %s518
      %p520 = pneg %p83
      %p521 = pneg %p80
      %p522 = scmp.lt.s32.totalorder %s29, 1
      %s523 = scalar_select %p522, %s29, 1
      %s524 = scalar_lea.vmem %s2, %s523
      %p525 = pneg %p109
      %p526 = pneg %p106
      %p527 = scmp.lt.s32.totalorder %s29, 1
      %s528 = scalar_select %p527, %s29, 1
      %s529 = smul.addr %s528, 4
      %s530 = smul.addr %s529, 4
      %s531 = scalar_lea.vmem %s3, %s530
      %p532 = pneg %p135
      %p533 = pneg %p132
      %p534 = scmp.lt.s32.totalorder %s29, 1
      %s535 = scalar_select %p534, %s29, 1
      %s536 = scalar_lea.vmem %s4, %s535
      %p537 = pneg %p161
      %p538 = pneg %p158
      %p539 = scmp.lt.s32.totalorder %s29, 1
      %s540 = scalar_select %p539, %s29, 1
      %s541 = smul.addr %s540, 4
      %s542 = smul.addr %s541, 4
      %s543 = scalar_lea.vmem %s5, %s542
      %p544 = pneg %p187
      %p545 = pneg %p184
      %p546 = scmp.lt.s32.totalorder %s29, 1
      %s547 = scalar_select %p546, %s29, 1
      %s548 = scalar_lea.vmem %s6, %s547
      %p549 = pneg %p213
      %p550 = pneg %p210
      %p551 = scmp.lt.s32.totalorder %s29, 1
      %s552 = scalar_select %p551, %s29, 1
      %s553 = scalar_lea.vmem %s7, %s552
      %p554 = pneg %p239
      %p555 = pneg %p236
      %p556 = scmp.lt.s32.totalorder %s29, 1
      %s557 = scalar_select %p556, %s29, 1
      %s558 = scalar_lea.vmem %s8, %s557
      %p559 = pneg %p265
      %p560 = pneg %p262
      %p561 = scmp.lt.s32.totalorder %s29, 1
      %s562 = scalar_select %p561, %s29, 1
      %s563 = smul.addr %s562, 4
      %s564 = smul.addr %s563, 4
      %s565 = scalar_lea.vmem %s9, %s564
      %p566 = pneg %p291
      %p567 = pneg %p288
      %p568 = scmp.lt.s32.totalorder %s29, 1
      %s569 = scalar_select %p568, %s29, 1
      %s570 = scalar_lea.vmem %s10, %s569
      %p571 = pneg %p317
      %p572 = pneg %p314
      %p573 = scmp.lt.s32.totalorder %s29, 1
      %s574 = scalar_select %p573, %s29, 1
      %s575 = smul.addr %s574, 16
      %s576 = smul.addr %s575, 4
      %s577 = scalar_lea.vmem %s11, %s576
      %p578 = pneg %p343
      %p579 = pneg %p340
      %p580 = scmp.lt.s32.totalorder %s29, 1
      %s581 = scalar_select %p580, %s29, 1
      %s582 = scalar_lea.vmem %s12, %s581
      %p583 = pneg %p369
      %p584 = pneg %p366
      %p585 = pneg %p395
      %p586 = pneg %p392
      %s587 = smul.u32 2, %s28
      %p588 = scmp.lt.s32.totalorder %s587, 1
      %s589 = scalar_select %p588, %s587, 1
      %s590 = smul.addr %s589, 8
      %s591 = scalar_lea.vmem %s13, %s590
      %s592 = smul.u32 2, %s28
      %p593 = scmp.lt.s32.totalorder %s592, 1
      %s594 = scalar_select %p593, %s592, 1
      %s595 = smul.addr %s594, 8
      %s596 = scalar_lea.vmem %s0, %s595
      %s597 = smul.u32 2, %s28
      %p598 = scmp.lt.s32.totalorder %s29, 1
      %s599 = scalar_select %p598, %s29, 1
      %s600 = scalar_lea.vmem %s1, %s599
      %p601 = scmp.lt.s32.totalorder %s29, 1
      %s602 = scalar_select %p601, %s29, 1
      %s603 = scalar_lea.vmem %s2, %s602
      %p604 = scmp.lt.s32.totalorder %s29, 1
      %s605 = scalar_select %p604, %s29, 1
      %s606 = smul.addr %s605, 4
      %s607 = smul.addr %s606, 4
      %s608 = scalar_lea.vmem %s3, %s607
      %p609 = scmp.lt.s32.totalorder %s29, 1
      %s610 = scalar_select %p609, %s29, 1
      %s611 = scalar_lea.vmem %s4, %s610
      %p612 = scmp.lt.s32.totalorder %s29, 1
      %s613 = scalar_select %p612, %s29, 1
      %s614 = smul.addr %s613, 4
      %s615 = smul.addr %s614, 4
      %s616 = scalar_lea.vmem %s5, %s615
      %p617 = scmp.lt.s32.totalorder %s29, 1
      %s618 = scalar_select %p617, %s29, 1
      %s619 = scalar_lea.vmem %s6, %s618
      %p620 = scmp.lt.s32.totalorder %s29, 1
      %s621 = scalar_select %p620, %s29, 1
      %s622 = scalar_lea.vmem %s7, %s621
      %p623 = scmp.lt.s32.totalorder %s29, 1
      %s624 = scalar_select %p623, %s29, 1
      %s625 = scalar_lea.vmem %s8, %s624
      %p626 = scmp.lt.s32.totalorder %s29, 1
      %s627 = scalar_select %p626, %s29, 1
      %s628 = smul.addr %s627, 4
      %s629 = smul.addr %s628, 4
      %s630 = scalar_lea.vmem %s9, %s629
      %p631 = scmp.lt.s32.totalorder %s29, 1
      %s632 = scalar_select %p631, %s29, 1
      %s633 = scalar_lea.vmem %s10, %s632
      %p634 = scmp.lt.s32.totalorder %s29, 1
      %s635 = scalar_select %p634, %s29, 1
      %s636 = smul.addr %s635, 16
      %s637 = smul.addr %s636, 4
      %s638 = scalar_lea.vmem %s11, %s637
      %p639 = scmp.lt.s32.totalorder %s29, 1
      %s640 = scalar_select %p639, %s29, 1
      %s641 = scalar_lea.vmem %s12, %s640
      %s642 = smul.u32 2, %s28
      %p643 = scmp.lt.s32.totalorder %s642, 1
      %s644 = scalar_select %p643, %s642, 1
      %s645 = smul.addr %s644, 8
      %s646 = scalar_lea.vmem %s13, %s645
      %s647 = smul.u32 2, %s28
      %p649 = scmp.eq.s32.totalorder %s29, 0
      // Predicated region
      $region73: #{transformer_forward.1} parent=71 // pred_check
        %p650 = pneg %p649
      $region74: #{transformer_forward.1} parent=71 // pred_check_branch
        %652 = sbr.rel (%p650) target = $region76
      $region75: #{transformer_forward.1} parent=71 // pred_region
        %v653 = vld [vmem:[%s596] sm:$0xff]
        %v654 = vld [vmem:[%s596 + $0x8] sm:$0xff]
        %vm655 = vcmask 261120
        %656 = vst.msk [vmem:[%s646] sm:$0xff] %vm655, %v653
        %657 = vst.msk [vmem:[%s646 + $0x8] sm:$0xff] %vm655, %v654
      $region76: #{transformer_forward.1} parent=71 // pred_fallthru
        _
      %v658 = vld [vmem:[%s646] sm:$0xff]
      %v659 = vld [vmem:[%s646 + $0x8] sm:$0xff]
      %v660 = vld [vmem:[%s600] sm:$0x1]
      %v661 = vld [vmem:[%s603] sm:$0x1]
      %vm662 = vcmask 261120
      %v663 = vsel %vm662, %v658, 0.0
      %664 = vadd.xlane.f32.xlu0 %v663
      %v665 = vpop.xlane.xlu0 %664
      %v666 = vsel %vm662, %v659, 0.0
      %667 = vadd.xlane.f32.xlu0 %v666
      %v668 = vpop.xlane.xlu0 %667
      %v669 = vrcp.pop 32.0
      %v670 = vmul.f32 %v665, %v669
      %v671 = vmul.f32 %v668, %v669
      %v672 = vsub.f32 %v658, %v670
      %v673 = vsub.f32 %v659, %v671
      %v674 = vmul.f32 %v672, %v672
      %v675 = vmul.f32 %v673, %v673
      %v676 = vsel %vm662, %v674, 0.0
      %677 = vadd.xlane.f32.xlu0 %v676
      %v678 = vpop.xlane.xlu0 %677
      %v679 = vsel %vm662, %v675, 0.0
      %680 = vadd.xlane.f32.xlu0 %v679
      %v681 = vpop.xlane.xlu0 %680
      %v682 = vmul.f32 %v678, %v669
      %v683 = vmul.f32 %v681, %v669
      %v684 = vadd.f32 %v682, 1e-05
      %v685 = vadd.f32 %v683, 1e-05
      %v686 = vrsqrt.pop %v684
      %v687 = vrsqrt.pop %v685
      %v688 = vmul.f32 %v672, %v686
      %v689 = vmul.f32 %v673, %v687
      %v691 = vlaneseq
      %v692 = vshrl.u32 %v691, 7
      %v693 = vsub.s32 0, %v692
      %v694 = vrot.slane %v660, %v693
      %v696 = vmul.f32 %v688, %v694
      %v697 = vmul.f32 %v689, %v694
      %v699 = vlaneseq
      %v700 = vshrl.u32 %v699, 7
      %v701 = vsub.s32 0, %v700
      %v702 = vrot.slane %v661, %v701
      %v704 = vadd.f32 %v696, %v702
      %v705 = vadd.f32 %v697, %v702
      %v706 = vpack.c.bf16 %v705, %v704
      %v707 = vld [vmem:[%s608] sm:$0xf]
      %v708 = vld [vmem:[%s608 + $0x4] sm:$0xf]
      %v709 = vld [vmem:[%s608 + $0x8] sm:$0xf]
      %v710 = vld [vmem:[%s608 + $0xc] sm:$0xf]
      %v711 = vld [vmem:[%s611] sm:$0x1]
      %v713 = vlaneseq
      %v714 = vshrl.u32 %v713, 7
      %v715 = vsub.s32 0, %v714
      %v716 = vrot.slane %v711, %v715
      %v722 = vunpack.c.l.b16 %v707
      %v723 = vunpack.c.l.b16 %v708
      %v724 = vunpack.c.l.b16 %v709
      %v725 = vunpack.c.l.b16 %v710
      %v726 = vpack.c.b16 %v723, %v722
      %v727 = vpack.c.b16 %v725, %v724
      %v731 = vsel %vm662, %v706, 0
      %733 = vmatprep.subr.bf16.mxu0 0
      %734 = vmatpush1.bf16.msra.mxu0 %v726
      %735 = vmatprep.subr.bf16.mxu0 0
      %736 = vmatpush1.bf16.msra.mxu0 %v727
      %737 = vmatprep.subr.bf16.mxu0 0
      %738 = vmatpush1.bf16.msra.mxu0 0
      %739 = vmatprep.subr.bf16.mxu0 0
      %740 = vmatpush1.bf16.msra.mxu0 0
      %741 = vmatprep.subr.bf16.mxu0 0
      %742 = vmatpush1.bf16.msra.mxu0 0
      %743 = vmatprep.subr.bf16.mxu0 0
      %744 = vmatpush1.bf16.msra.mxu0 0
      %745 = vmatprep.subr.bf16.mxu0 0
      %746 = vmatpush1.bf16.msra.mxu0 0
      %747 = vmatprep.subr.bf16.mxu0 0
      %748 = vmatpush1.bf16.msra.mxu0 0
      %749 = vmatprep.subr.bf16.mxu0 0
      %750 = vmatpush1.bf16.msra.mxu0 0
      %751 = vmatprep.subr.bf16.mxu0 0
      %752 = vmatpush1.bf16.msra.mxu0 0
      %753 = vmatprep.subr.bf16.mxu0 0
      %754 = vmatpush1.bf16.msra.mxu0 0
      %755 = vmatprep.subr.bf16.mxu0 0
      %756 = vmatpush1.bf16.msra.mxu0 0
      %757 = vmatprep.subr.bf16.mxu0 0
      %758 = vmatpush1.bf16.msra.mxu0 0
      %759 = vmatprep.subr.bf16.mxu0 0
      %760 = vmatpush1.bf16.msra.mxu0 0
      %761 = vmatprep.subr.bf16.mxu0 0
      %762 = vmatpush1.bf16.msra.mxu0 0
      %763 = vmatprep.subr.bf16.mxu0 0
      %764 = vmatpush1.bf16.msra.mxu0 0
      %765 = vmatprep.mubr.bf16.mxu0 0
      %766 = vmatmul.mubr.bf16.gmra.mrb[0].mxu0 %v731
      %v767 = vpop.f32.mrb[0].mxu0
      %v768 = vadd.f32 %v716, %v767
      %v769 = vpop.f32.mrb[0].mxu0
      %v770 = vpop.f32.mrb[0].mxu0
      %v771 = vadd.f32 %v716, %v770
      %v772 = vpop.f32.mrb[0].mxu0
      %773 = vdwg.mxu0
      %v774 = vpack.c.bf16 %v771, %v768
      %v776 = vunpack.c.l.b16 %v774
      %v777 = vunpack.c.h.b16 %v774
      %v778 = vpack.c.b16 %v776, %v776
      %v779 = vpack.c.b16 %v777, %v777
      %780 = vrot.lane.b32.xlu0 %v778, 96
      %v781 = vpop.permute.xlu0 %780
      %vm782 = vcmask 64512
      %v784 = vsel %vm782, %v778, 0
      %v787 = vsel %vm782, %v781, 0
      %789 = vmatprep.subr.bf16.mxu0 0
      %790 = vmatpush1.bf16.xpose.msra.mxu0 %v787
      %791 = vmatprep.subr.bf16.mxu0 0
      %792 = vmatpush1.bf16.xpose.msra.mxu0 0
      %793 = vmatprep.subr.bf16.mxu0 0
      %794 = vmatpush1.bf16.xpose.msra.mxu0 0
      %795 = vmatprep.subr.bf16.mxu0 0
      %796 = vmatpush1.bf16.xpose.msra.mxu0 0
      %797 = vmatprep.subr.bf16.mxu0 0
      %798 = vmatpush1.bf16.xpose.msra.mxu0 0
      %799 = vmatprep.subr.bf16.mxu0 0
      %800 = vmatpush1.bf16.xpose.msra.mxu0 0
      %801 = vmatprep.subr.bf16.mxu0 0
      %802 = vmatpush1.bf16.xpose.msra.mxu0 0
      %803 = vmatprep.subr.bf16.mxu0 0
      %804 = vmatpush1.bf16.xpose.msra.mxu0 0
      %805 = vmatprep.subr.bf16.mxu0 0
      %806 = vmatpush1.bf16.xpose.msra.mxu0 0
      %807 = vmatprep.subr.bf16.mxu0 0
      %808 = vmatpush1.bf16.xpose.msra.mxu0 0
      %809 = vmatprep.subr.bf16.mxu0 0
      %810 = vmatpush1.bf16.xpose.msra.mxu0 0
      %811 = vmatprep.subr.bf16.mxu0 0
      %812 = vmatpush1.bf16.xpose.msra.mxu0 0
      %813 = vmatprep.subr.bf16.mxu0 0
      %814 = vmatpush1.bf16.xpose.msra.mxu0 0
      %815 = vmatprep.subr.bf16.mxu0 0
      %816 = vmatpush1.bf16.xpose.msra.mxu0 0
      %817 = vmatprep.subr.bf16.mxu0 0
      %818 = vmatpush1.bf16.xpose.msra.mxu0 0
      %819 = vmatprep.subr.bf16.mxu0 0
      %820 = vmatpush1.bf16.xpose.msra.mxu0 0
      %821 = vmatprep.mubr.bf16.mxu0 0
      %822 = vmatmul.mubr.bf16.gmra.mrb[0].mxu0 %v784
      %v823 = vpop.f32.mrb[0].mxu0
      %v824 = vadd.f32 0.0, %v823
      %v825 = vpop.f32.mrb[0].mxu0
      %v826 = vpop.f32.mrb[0].mxu0
      %v827 = vpop.f32.mrb[0].mxu0
      %828 = vdwg.mxu0
      %829 = vrot.lane.b32.xlu0 %v779, 96
      %v830 = vpop.permute.xlu0 %829
      %v832 = vsel %vm782, %v779, 0
      %v835 = vsel %vm782, %v830, 0
      %837 = vmatprep.subr.bf16.mxu0 0
      %838 = vmatpush1.bf16.xpose.msra.mxu0 %v835
      %839 = vmatprep.subr.bf16.mxu0 0
      %840 = vmatpush1.bf16.xpose.msra.mxu0 0
      %841 = vmatprep.subr.bf16.mxu0 0
      %842 = vmatpush1.bf16.xpose.msra.mxu0 0
      %843 = vmatprep.subr.bf16.mxu0 0
      %844 = vmatpush1.bf16.xpose.msra.mxu0 0
      %845 = vmatprep.subr.bf16.mxu0 0
      %846 = vmatpush1.bf16.xpose.msra.mxu0 0
      %847 = vmatprep.subr.bf16.mxu0 0
      %848 = vmatpush1.bf16.xpose.msra.mxu0 0
      %849 = vmatprep.subr.bf16.mxu0 0
      %850 = vmatpush1.bf16.xpose.msra.mxu0 0
      %851 = vmatprep.subr.bf16.mxu0 0
      %852 = vmatpush1.bf16.xpose.msra.mxu0 0
      %853 = vmatprep.subr.bf16.mxu0 0
      %854 = vmatpush1.bf16.xpose.msra.mxu0 0
      %855 = vmatprep.subr.bf16.mxu0 0
      %856 = vmatpush1.bf16.xpose.msra.mxu0 0
      %857 = vmatprep.subr.bf16.mxu0 0
      %858 = vmatpush1.bf16.xpose.msra.mxu0 0
      %859 = vmatprep.subr.bf16.mxu0 0
      %860 = vmatpush1.bf16.xpose.msra.mxu0 0
      %861 = vmatprep.subr.bf16.mxu0 0
      %862 = vmatpush1.bf16.xpose.msra.mxu0 0
      %863 = vmatprep.subr.bf16.mxu0 0
      %864 = vmatpush1.bf16.xpose.msra.mxu0 0
      %865 = vmatprep.subr.bf16.mxu0 0
      %866 = vmatpush1.bf16.xpose.msra.mxu0 0
      %867 = vmatprep.subr.bf16.mxu0 0
      %868 = vmatpush1.bf16.xpose.msra.mxu0 0
      %869 = vmatprep.mubr.bf16.mxu0 0
      %870 = vmatmul.mubr.bf16.gmra.mrb[0].mxu0 %v832
      %v871 = vpop.f32.mrb[0].mxu0
      %v872 = vadd.f32 0.0, %v871
      %v873 = vpop.f32.mrb[0].mxu0
      %v874 = vpop.f32.mrb[0].mxu0
      %v875 = vpop.f32.mrb[0].mxu0
      %876 = vdwg.mxu0
      %v877 = vsel %vm782, %v824, -inf
      %878 = vmax.xlane.f32.xlu0 %v877
      %v879 = vpop.xlane.xlu0 %878
      %v880 = vsel %vm782, %v872, -inf
      %881 = vmax.xlane.f32.xlu0 %v880
      %v882 = vpop.xlane.xlu0 %881
      %v883 = vsub.f32 %v824, %v879
      %v884 = vsub.f32 %v872, %v882
      %v885 = vmul.f32 %v883, 1.442695
      %v886 = vpow.pop %v885
      %v887 = vmul.f32 %v884, 1.442695
      %v888 = vpow.pop %v887
      %v889 = vsel %vm782, %v886, 0.0
      %890 = vadd.xlane.f32.xlu0 %v889
      %v891 = vpop.xlane.xlu0 %890
      %v892 = vsel %vm782, %v888, 0.0
      %893 = vadd.xlane.f32.xlu0 %v892
      %v894 = vpop.xlane.xlu0 %893
      %v895 = vrcp.pop %v891
      %v896 = vrcp.pop %v894
      %v897 = vmul.f32 %v886, %v895
      %v898 = vmul.f32 %v888, %v896
      %v899 = vpack.c.bf16 %v897, %v897
      %v900 = vpack.c.bf16 %v898, %v898
      %901 = vrot.lane.b32.xlu0 %v778, 64
      %v902 = vpop.permute.xlu0 %901
      %v904 = vsel %vm782, %v899, 0
      %vm906 = vcmask 1043456
      %v908 = vsel %vm906, %v902, 0
      %910 = vmatprep.subr.bf16.mxu0 0
      %911 = vmatpush1.bf16.msra.mxu0 %v908
      %912 = vmatprep.subr.bf16.mxu0 0
      %913 = vmatpush1.bf16.msra.mxu0 0
      %914 = vmatprep.subr.bf16.mxu0 0
      %915 = vmatpush1.bf16.msra.mxu0 0
      %916 = vmatprep.subr.bf16.mxu0 0
      %917 = vmatpush1.bf16.msra.mxu0 0
      %918 = vmatprep.subr.bf16.mxu0 0
      %919 = vmatpush1.bf16.msra.mxu0 0
      %920 = vmatprep.subr.bf16.mxu0 0
      %921 = vmatpush1.bf16.msra.mxu0 0
      %922 = vmatprep.subr.bf16.mxu0 0
      %923 = vmatpush1.bf16.msra.mxu0 0
      %924 = vmatprep.subr.bf16.mxu0 0
      %925 = vmatpush1.bf16.msra.mxu0 0
      %926 = vmatprep.subr.bf16.mxu0 0
      %927 = vmatpush1.bf16.msra.mxu0 0
      %928 = vmatprep.subr.bf16.mxu0 0
      %929 = vmatpush1.bf16.msra.mxu0 0
      %930 = vmatprep.subr.bf16.mxu0 0
      %931 = vmatpush1.bf16.msra.mxu0 0
      %932 = vmatprep.subr.bf16.mxu0 0
      %933 = vmatpush1.bf16.msra.mxu0 0
      %934 = vmatprep.subr.bf16.mxu0 0
      %935 = vmatpush1.bf16.msra.mxu0 0
      %936 = vmatprep.subr.bf16.mxu0 0
      %937 = vmatpush1.bf16.msra.mxu0 0
      %938 = vmatprep.subr.bf16.mxu0 0
      %939 = vmatpush1.bf16.msra.mxu0 0
      %940 = vmatprep.subr.bf16.mxu0 0
      %941 = vmatpush1.bf16.msra.mxu0 0
      %942 = vmatprep.mubr.bf16.mxu0 0
      %943 = vmatmul.mubr.bf16.gmra.mrb[0].mxu0 %v904
      %v944 = vpop.f32.mrb[0].mxu0
      %v945 = vadd.f32 0.0, %v944
      %v946 = vpop.f32.mrb[0].mxu0
      %v947 = vpop.f32.mrb[0].mxu0
      %v948 = vpop.f32.mrb[0].mxu0
      %949 = vdwg.mxu0
      %950 = vrot.lane.b32.xlu0 %v779, 64
      %v951 = vpop.permute.xlu0 %950
      %v953 = vsel %vm782, %v900, 0
      %v956 = vsel %vm906, %v951, 0
      %958 = vmatprep.subr.bf16.mxu0 0
      %959 = vmatpush1.bf16.msra.mxu0 %v956
      %960 = vmatprep.subr.bf16.mxu0 0
      %961 = vmatpush1.bf16.msra.mxu0 0
      %962 = vmatprep.subr.bf16.mxu0 0
      %963 = vmatpush1.bf16.msra.mxu0 0
      %964 = vmatprep.subr.bf16.mxu0 0
      %965 = vmatpush1.bf16.msra.mxu0 0
      %966 = vmatprep.subr.bf16.mxu0 0
      %967 = vmatpush1.bf16.msra.mxu0 0
      %968 = vmatprep.subr.bf16.mxu0 0
      %969 = vmatpush1.bf16.msra.mxu0 0
      %970 = vmatprep.subr.bf16.mxu0 0
      %971 = vmatpush1.bf16.msra.mxu0 0
      %972 = vmatprep.subr.bf16.mxu0 0
      %973 = vmatpush1.bf16.msra.mxu0 0
      %974 = vmatprep.subr.bf16.mxu0 0
      %975 = vmatpush1.bf16.msra.mxu0 0
      %976 = vmatprep.subr.bf16.mxu0 0
      %977 = vmatpush1.bf16.msra.mxu0 0
      %978 = vmatprep.subr.bf16.mxu0 0
      %979 = vmatpush1.bf16.msra.mxu0 0
      %980 = vmatprep.subr.bf16.mxu0 0
      %981 = vmatpush1.bf16.msra.mxu0 0
      %982 = vmatprep.subr.bf16.mxu0 0
      %983 = vmatpush1.bf16.msra.mxu0 0
      %984 = vmatprep.subr.bf16.mxu0 0
      %985 = vmatpush1.bf16.msra.mxu0 0
      %986 = vmatprep.subr.bf16.mxu0 0
      %987 = vmatpush1.bf16.msra.mxu0 0
      %988 = vmatprep.subr.bf16.mxu0 0
      %989 = vmatpush1.bf16.msra.mxu0 0
      %990 = vmatprep.mubr.bf16.mxu0 0
      %991 = vmatmul.mubr.bf16.gmra.mrb[0].mxu0 %v953
      %v992 = vpop.f32.mrb[0].mxu0
      %v993 = vadd.f32 0.0, %v992
      %v994 = vpop.f32.mrb[0].mxu0
      %v995 = vpop.f32.mrb[0].mxu0
      %v996 = vpop.f32.mrb[0].mxu0
      %997 = vdwg.mxu0
      %v998 = vpack.c.bf16 %v993, %v945
      %v999 = vld [vmem:[%s616] sm:$0xf]
      %1000 = vrot.lane.b32.xlu0 %v778, 120
      %v1001 = vpop.permute.xlu0 %1000
      %1002 = vrot.lane.b32.xlu0 %v778, 88
      %v1003 = vpop.permute.xlu0 %1002
      %v1005 = vsel %vm782, %v1001, 0
      %v1008 = vsel %vm782, %v1003, 0
      %1010 = vmatprep.subr.bf16.mxu0 0
      %1011 = vmatpush1.bf16.xpose.msra.mxu0 %v1008
      %1012 = vmatprep.subr.bf16.mxu0 0
      %1013 = vmatpush1.bf16.xpose.msra.mxu0 0
      %1014 = vmatprep.subr.bf16.mxu0 0
      %1015 = vmatpush1.bf16.xpose.msra.mxu0 0
      %1016 = vmatprep.subr.bf16.mxu0 0
      %1017 = vmatpush1.bf16.xpose.msra.mxu0 0
      %1018 = vmatprep.subr.bf16.mxu0 0
      %1019 = vmatpush1.bf16.xpose.msra.mxu0 0
      %1020 = vmatprep.subr.bf16.mxu0 0
      %1021 = vmatpush1.bf16.xpose.msra.mxu0 0
      %1022 = vmatprep.subr.bf16.mxu0 0
      %1023 = vmatpush1.bf16.xpose.msra.mxu0 0
      %1024 = vmatprep.subr.bf16.mxu0 0
      %1025 = vmatpush1.bf16.xpose.msra.mxu0 0
      %1026 = vmatprep.subr.bf16.mxu0 0
      %1027 = vmatpush1.bf16.xpose.msra.mxu0 0
      %1028 = vmatprep.subr.bf16.mxu0 0
      %1029 = vmatpush1.bf16.xpose.msra.mxu0 0
      %1030 = vmatprep.subr.bf16.mxu0 0
      %1031 = vmatpush1.bf16.xpose.msra.mxu0 0
      %1032 = vmatprep.subr.bf16.mxu0 0
      %1033 = vmatpush1.bf16.xpose.msra.mxu0 0
      %1034 = vmatprep.subr.bf16.mxu0 0
      %1035 = vmatpush1.bf16.xpose.msra.mxu0 0
      %1036 = vmatprep.subr.bf16.mxu0 0
      %1037 = vmatpush1.bf16.xpose.msra.mxu0 0
      %1038 = vmatprep.subr.bf16.mxu0 0
      %1039 = vmatpush1.bf16.xpose.msra.mxu0 0
      %1040 = vmatprep.subr.bf16.mxu0 0
      %1041 = vmatpush1.bf16.xpose.msra.mxu0 0
      %1042 = vmatprep.mubr.bf16.mxu0 0
      %1043 = vmatmul.mubr.bf16.gmra.mrb[0].mxu0 %v1005
      %v1044 = vpop.f32.mrb[0].mxu0
      %v1045 = vadd.f32 0.0, %v1044
      %v1046 = vpop.f32.mrb[0].mxu0
      %v1047 = vpop.f32.mrb[0].mxu0
      %v1048 = vpop.f32.mrb[0].mxu0
      %1049 = vdwg.mxu0
      %1050 = vrot.lane.b32.xlu0 %v779, 120
      %v1051 = vpop.permute.xlu0 %1050
      %1052 = vrot.lane.b32.xlu0 %v779, 88
      %v1053 = vpop.permute.xlu0 %1052
      %v1055 = vsel %vm782, %v1051, 0
      %v1058 = vsel %vm782, %v1053, 0
      %1060 = vmatprep.subr.bf16.mxu0 0
      %1061 = vmatpush1.bf16.xpose.msra.mxu0 %v1058
      %1062 = vmatprep.subr.bf16.mxu0 0
      %1063 = vmatpush1.bf16.xpose.msra.mxu0 0
      %1064 = vmatprep.subr.bf16.mxu0 0
      %1065 = vmatpush1.bf16.xpose.msra.mxu0 0
      %1066 = vmatprep.subr.bf16.mxu0 0
      %1067 = vmatpush1.bf16.xpose.msra.mxu0 0
      %1068 = vmatprep.subr.bf16.mxu0 0
      %1069 = vmatpush1.bf16.xpose.msra.mxu0 0
      %1070 = vmatprep.subr.bf16.mxu0 0
      %1071 = vmatpush1.bf16.xpose.msra.mxu0 0
      %1072 = vmatprep.subr.bf16.mxu0 0
      %1073 = vmatpush1.bf16.xpose.msra.mxu0 0
      %1074 = vmatprep.subr.bf16.mxu0 0
      %1075 = vmatpush1.bf16.xpose.msra.mxu0 0
      %1076 = vmatprep.subr.bf16.mxu0 0
      %1077 = vmatpush1.bf16.xpose.msra.mxu0 0
      %1078 = vmatprep.subr.bf16.mxu0 0
      %1079 = vmatpush1.bf16.xpose.msra.mxu0 0
      %1080 = vmatprep.subr.bf16.mxu0 0
      %1081 = vmatpush1.bf16.xpose.msra.mxu0 0
      %1082 = vmatprep.subr.bf16.mxu0 0
      %1083 = vmatpush1.bf16.xpose.msra.mxu0 0
      %1084 = vmatprep.subr.bf16.mxu0 0
      %1085 = vmatpush1.bf16.xpose.msra.mxu0 0
      %1086 = vmatprep.subr.bf16.mxu0 0
      %1087 = vmatpush1.bf16.xpose.msra.mxu0 0
      %1088 = vmatprep.subr.bf16.mxu0 0
      %1089 = vmatpush1.bf16.xpose.msra.mxu0 0
      %1090 = vmatprep.subr.bf16.mxu0 0
      %1091 = vmatpush1.bf16.xpose.msra.mxu0 0
      %1092 = vmatprep.mubr.bf16.mxu0 0
      %1093 = vmatmul.mubr.bf16.gmra.mrb[0].mxu0 %v1055
      %v1094 = vpop.f32.mrb[0].mxu0
      %v1095 = vadd.f32 0.0, %v1094
      %v1096 = vpop.f32.mrb[0].mxu0
      %v1097 = vpop.f32.mrb[0].mxu0
      %v1098 = vpop.f32.mrb[0].mxu0
      %1099 = vdwg.mxu0
      %v1100 = vsel %vm782, %v1045, -inf
      %1101 = vmax.xlane.f32.xlu0 %v1100
      %v1102 = vpop.xlane.xlu0 %1101
      %v1103 = vsel %vm782, %v1095, -inf
      %1104 = vmax.xlane.f32.xlu0 %v1103
      %v1105 = vpop.xlane.xlu0 %1104
      %v1106 = vsub.f32 %v1045, %v1102
      %v1107 = vsub.f32 %v1095, %v1105
      %v1108 = vmul.f32 %v1106, 1.442695
      %v1109 = vpow.pop %v1108
      %v1110 = vmul.f32 %v1107, 1.442695
      %v1111 = vpow.pop %v1110
      %v1112 = vsel %vm782, %v1109, 0.0
      %1113 = vadd.xlane.f32.xlu0 %v1112
      %v1114 = vpop.xlane.xlu0 %1113
      %v1115 = vsel %vm782, %v1111, 0.0
      %1116 = vadd.xlane.f32.xlu0 %v1115
      %v1117 = vpop.xlane.xlu0 %1116
      %v1118 = vrcp.pop %v1114
      %v1119 = vrcp.pop %v1117
      %v1120 = vmul.f32 %v1109, %v1118
      %v1121 = vmul.f32 %v1111, %v1119
      %v1122 = vpack.c.bf16 %v1120, %v1120
      %v1123 = vpack.c.bf16 %v1121, %v1121
      %1124 = vrot.lane.b32.xlu0 %v778, 56
      %v1125 = vpop.permute.xlu0 %1124
      %v1127 = vsel %vm782, %v1122, 0
      %v1130 = vsel %vm906, %v1125, 0
      %1132 = vmatprep.subr.bf16.mxu0 0
      %1133 = vmatpush1.bf16.msra.mxu0 %v1130
      %1134 = vmatprep.subr.bf16.mxu0 0
      %1135 = vmatpush1.bf16.msra.mxu0 0
      %1136 = vmatprep.subr.bf16.mxu0 0
      %1137 = vmatpush1.bf16.msra.mxu0 0
      %1138 = vmatprep.subr.bf16.mxu0 0
      %1139 = vmatpush1.bf16.msra.mxu0 0
      %1140 = vmatprep.subr.bf16.mxu0 0
      %1141 = vmatpush1.bf16.msra.mxu0 0
      %1142 = vmatprep.subr.bf16.mxu0 0
      %1143 = vmatpush1.bf16.msra.mxu0 0
      %1144 = vmatprep.subr.bf16.mxu0 0
      %1145 = vmatpush1.bf16.msra.mxu0 0
      %1146 = vmatprep.subr.bf16.mxu0 0
      %1147 = vmatpush1.bf16.msra.mxu0 0
      %1148 = vmatprep.subr.bf16.mxu0 0
      %1149 = vmatpush1.bf16.msra.mxu0 0
      %1150 = vmatprep.subr.bf16.mxu0 0
      %1151 = vmatpush1.bf16.msra.mxu0 0
      %1152 = vmatprep.subr.bf16.mxu0 0
      %1153 = vmatpush1.bf16.msra.mxu0 0
      %1154 = vmatprep.subr.bf16.mxu0 0
      %1155 = vmatpush1.bf16.msra.mxu0 0
      %1156 = vmatprep.subr.bf16.mxu0 0
      %1157 = vmatpush1.bf16.msra.mxu0 0
      %1158 = vmatprep.subr.bf16.mxu0 0
      %1159 = vmatpush1.bf16.msra.mxu0 0
      %1160 = vmatprep.subr.bf16.mxu0 0
      %1161 = vmatpush1.bf16.msra.mxu0 0
      %1162 = vmatprep.subr.bf16.mxu0 0
      %1163 = vmatpush1.bf16.msra.mxu0 0
      %1164 = vmatprep.mubr.bf16.mxu0 0
      %1165 = vmatmul.mubr.bf16.gmra.mrb[0].mxu0 %v1127
      %v1166 = vpop.f32.mrb[0].mxu0
      %v1167 = vadd.f32 0.0, %v1166
      %v1168 = vpop.f32.mrb[0].mxu0
      %v1169 = vpop.f32.mrb[0].mxu0
      %v1170 = vpop.f32.mrb[0].mxu0
      %1171 = vdwg.mxu0
      %1172 = vrot.lane.b32.xlu0 %v779, 56
      %v1173 = vpop.permute.xlu0 %1172
      %v1175 = vsel %vm782, %v1123, 0
      %v1178 = vsel %vm906, %v1173, 0
      %1180 = vmatprep.subr.bf16.mxu0 0
      %1181 = vmatpush1.bf16.msra.mxu0 %v1178
      %1182 = vmatprep.subr.bf16.mxu0 0
      %1183 = vmatpush1.bf16.msra.mxu0 0
      %1184 = vmatprep.subr.bf16.mxu0 0
      %1185 = vmatpush1.bf16.msra.mxu0 0
      %1186 = vmatprep.subr.bf16.mxu0 0
      %1187 = vmatpush1.bf16.msra.mxu0 0
      %1188 = vmatprep.subr.bf16.mxu0 0
      %1189 = vmatpush1.bf16.msra.mxu0 0
      %1190 = vmatprep.subr.bf16.mxu0 0
      %1191 = vmatpush1.bf16.msra.mxu0 0
      %1192 = vmatprep.subr.bf16.mxu0 0
      %1193 = vmatpush1.bf16.msra.mxu0 0
      %1194 = vmatprep.subr.bf16.mxu0 0
      %1195 = vmatpush1.bf16.msra.mxu0 0
      %1196 = vmatprep.subr.bf16.mxu0 0
      %1197 = vmatpush1.bf16.msra.mxu0 0
      %1198 = vmatprep.subr.bf16.mxu0 0
      %1199 = vmatpush1.bf16.msra.mxu0 0
      %1200 = vmatprep.subr.bf16.mxu0 0
      %1201 = vmatpush1.bf16.msra.mxu0 0
      %1202 = vmatprep.subr.bf16.mxu0 0
      %1203 = vmatpush1.bf16.msra.mxu0 0
      %1204 = vmatprep.subr.bf16.mxu0 0
      %1205 = vmatpush1.bf16.msra.mxu0 0
      %1206 = vmatprep.subr.bf16.mxu0 0
      %1207 = vmatpush1.bf16.msra.mxu0 0
      %1208 = vmatprep.subr.bf16.mxu0 0
      %1209 = vmatpush1.bf16.msra.mxu0 0
      %1210 = vmatprep.subr.bf16.mxu0 0
      %1211 = vmatpush1.bf16.msra.mxu0 0
      %1212 = vmatprep.mubr.bf16.mxu0 0
      %1213 = vmatmul.mubr.bf16.gmra.mrb[0].mxu0 %v1175
      %v1214 = vpop.f32.mrb[0].mxu0
      %v1215 = vadd.f32 0.0, %v1214
      %v1216 = vpop.f32.mrb[0].mxu0
      %v1217 = vpop.f32.mrb[0].mxu0
      %v1218 = vpop.f32.mrb[0].mxu0
      %1219 = vdwg.mxu0
      %v1220 = vpack.c.bf16 %v1215, %v1167
      %v1221 = vld [vmem:[%s616 + $0x4] sm:$0xf]
      %v1223 = vsel %vm782, %v1220, 0
      %v1226 = vsel %vm906, %v1221, 0
      %1228 = vmatprep.subr.bf16.mxu0 0
      %1229 = vmatpush1.bf16.msra.mxu0 %v1226
      %1230 = vmatprep.subr.bf16.mxu0 0
      %1231 = vmatpush1.bf16.msra.mxu0 0
      %1232 = vmatprep.subr.bf16.mxu0 0
      %1233 = vmatpush1.bf16.msra.mxu0 0
      %1234 = vmatprep.subr.bf16.mxu0 0
      %1235 = vmatpush1.bf16.msra.mxu0 0
      %1236 = vmatprep.subr.bf16.mxu0 0
      %1237 = vmatpush1.bf16.msra.mxu0 0
      %1238 = vmatprep.subr.bf16.mxu0 0
      %1239 = vmatpush1.bf16.msra.mxu0 0
      %1240 = vmatprep.subr.bf16.mxu0 0
      %1241 = vmatpush1.bf16.msra.mxu0 0
      %1242 = vmatprep.subr.bf16.mxu0 0
      %1243 = vmatpush1.bf16.msra.mxu0 0
      %1244 = vmatprep.subr.bf16.mxu0 0
      %1245 = vmatpush1.bf16.msra.mxu0 0
      %1246 = vmatprep.subr.bf16.mxu0 0
      %1247 = vmatpush1.bf16.msra.mxu0 0
      %1248 = vmatprep.subr.bf16.mxu0 0
      %1249 = vmatpush1.bf16.msra.mxu0 0
      %1250 = vmatprep.subr.bf16.mxu0 0
      %1251 = vmatpush1.bf16.msra.mxu0 0
      %1252 = vmatprep.subr.bf16.mxu0 0
      %1253 = vmatpush1.bf16.msra.mxu0 0
      %1254 = vmatprep.subr.bf16.mxu0 0
      %1255 = vmatpush1.bf16.msra.mxu0 0
      %1256 = vmatprep.subr.bf16.mxu0 0
      %1257 = vmatpush1.bf16.msra.mxu0 0
      %1258 = vmatprep.subr.bf16.mxu0 0
      %1259 = vmatpush1.bf16.msra.mxu0 0
      %1260 = vmatprep.mubr.bf16.mxu0 0
      %1261 = vmatmul.mubr.bf16.gmra.mrb[0].mxu0 %v1223
      %v1262 = vpop.f32.mrb[0].mxu0
      %v1263 = vadd.f32 0.0, %v1262
      %v1264 = vpop.f32.mrb[0].mxu0
      %v1265 = vpop.f32.mrb[0].mxu0
      %v1266 = vadd.f32 0.0, %v1265
      %v1267 = vpop.f32.mrb[0].mxu0
      %1268 = vdwg.mxu0
      %v1270 = vsel %vm782, %v998, 0
      %v1273 = vsel %vm906, %v999, 0
      %1275 = vmatprep.subr.bf16.mxu0 0
      %1276 = vmatpush1.bf16.msra.mxu0 %v1273
      %1277 = vmatprep.subr.bf16.mxu0 0
      %1278 = vmatpush1.bf16.msra.mxu0 0
      %1279 = vmatprep.subr.bf16.mxu0 0
      %1280 = vmatpush1.bf16.msra.mxu0 0
      %1281 = vmatprep.subr.bf16.mxu0 0
      %1282 = vmatpush1.bf16.msra.mxu0 0
      %1283 = vmatprep.subr.bf16.mxu0 0
      %1284 = vmatpush1.bf16.msra.mxu0 0
      %1285 = vmatprep.subr.bf16.mxu0 0
      %1286 = vmatpush1.bf16.msra.mxu0 0
      %1287 = vmatprep.subr.bf16.mxu0 0
      %1288 = vmatpush1.bf16.msra.mxu0 0
      %1289 = vmatprep.subr.bf16.mxu0 0
      %1290 = vmatpush1.bf16.msra.mxu0 0
      %1291 = vmatprep.subr.bf16.mxu0 0
      %1292 = vmatpush1.bf16.msra.mxu0 0
      %1293 = vmatprep.subr.bf16.mxu0 0
      %1294 = vmatpush1.bf16.msra.mxu0 0
      %1295 = vmatprep.subr.bf16.mxu0 0
      %1296 = vmatpush1.bf16.msra.mxu0 0
      %1297 = vmatprep.subr.bf16.mxu0 0
      %1298 = vmatpush1.bf16.msra.mxu0 0
      %1299 = vmatprep.subr.bf16.mxu0 0
      %1300 = vmatpush1.bf16.msra.mxu0 0
      %1301 = vmatprep.subr.bf16.mxu0 0
      %1302 = vmatpush1.bf16.msra.mxu0 0
      %1303 = vmatprep.subr.bf16.mxu0 0
      %1304 = vmatpush1.bf16.msra.mxu0 0
      %1305 = vmatprep.subr.bf16.mxu0 0
      %1306 = vmatpush1.bf16.msra.mxu0 0
      %1307 = vmatprep.mubr.bf16.mxu0 0
      %1308 = vmatmul.mubr.bf16.gmra.mrb[0].mxu0 %v1270
      %v1309 = vpop.f32.mrb[0].mxu0
      %v1310 = vadd.f32 %v1263, %v1309
      %v1311 = vpop.f32.mrb[0].mxu0
      %v1312 = vpop.f32.mrb[0].mxu0
      %v1313 = vadd.f32 %v1266, %v1312
      %v1314 = vpop.f32.mrb[0].mxu0
      %1315 = vdwg.mxu0
      %1316 = vrot.lane.b32.xlu0 %v778, 112
      %v1317 = vpop.permute.xlu0 %1316
      %1318 = vrot.lane.b32.xlu0 %v778, 80
      %v1319 = vpop.permute.xlu0 %1318
      %v1321 = vsel %vm782, %v1317, 0
      %v1324 = vsel %vm782, %v1319, 0
      %1326 = vmatprep.subr.bf16.mxu0 0
      %1327 = vmatpush1.bf16.xpose.msra.mxu0 %v1324
      %1328 = vmatprep.subr.bf16.mxu0 0
      %1329 = vmatpush1.bf16.xpose.msra.mxu0 0
      %1330 = vmatprep.subr.bf16.mxu0 0
      %1331 = vmatpush1.bf16.xpose.msra.mxu0 0
      %1332 = vmatprep.subr.bf16.mxu0 0
      %1333 = vmatpush1.bf16.xpose.msra.mxu0 0
      %1334 = vmatprep.subr.bf16.mxu0 0
      %1335 = vmatpush1.bf16.xpose.msra.mxu0 0
      %1336 = vmatprep.subr.bf16.mxu0 0
      %1337 = vmatpush1.bf16.xpose.msra.mxu0 0
      %1338 = vmatprep.subr.bf16.mxu0 0
      %1339 = vmatpush1.bf16.xpose.msra.mxu0 0
      %1340 = vmatprep.subr.bf16.mxu0 0
      %1341 = vmatpush1.bf16.xpose.msra.mxu0 0
      %1342 = vmatprep.subr.bf16.mxu0 0
      %1343 = vmatpush1.bf16.xpose.msra.mxu0 0
      %1344 = vmatprep.subr.bf16.mxu0 0
      %1345 = vmatpush1.bf16.xpose.msra.mxu0 0
      %1346 = vmatprep.subr.bf16.mxu0 0
      %1347 = vmatpush1.bf16.xpose.msra.mxu0 0
      %1348 = vmatprep.subr.bf16.mxu0 0
      %1349 = vmatpush1.bf16.xpose.msra.mxu0 0
      %1350 = vmatprep.subr.bf16.mxu0 0
      %1351 = vmatpush1.bf16.xpose.msra.mxu0 0
      %1352 = vmatprep.subr.bf16.mxu0 0
      %1353 = vmatpush1.bf16.xpose.msra.mxu0 0
      %1354 = vmatprep.subr.bf16.mxu0 0
      %1355 = vmatpush1.bf16.xpose.msra.mxu0 0
      %1356 = vmatprep.subr.bf16.mxu0 0
      %1357 = vmatpush1.bf16.xpose.msra.mxu0 0
      %1358 = vmatprep.mubr.bf16.mxu0 0
      %1359 = vmatmul.mubr.bf16.gmra.mrb[0].mxu0 %v1321
      %v1360 = vpop.f32.mrb[0].mxu0
      %v1361 = vadd.f32 0.0, %v1360
      %v1362 = vpop.f32.mrb[0].mxu0
      %v1363 = vpop.f32.mrb[0].mxu0
      %v1364 = vpop.f32.mrb[0].mxu0
      %1365 = vdwg.mxu0
      %1366 = vrot.lane.b32.xlu0 %v779, 112
      %v1367 = vpop.permute.xlu0 %1366
      %1368 = vrot.lane.b32.xlu0 %v779, 80
      %v1369 = vpop.permute.xlu0 %1368
      %v1371 = vsel %vm782, %v1367, 0
      %v1374 = vsel %vm782, %v1369, 0
      %1376 = vmatprep.subr.bf16.mxu0 0
      %1377 = vmatpush1.bf16.xpose.msra.mxu0 %v1374
      %1378 = vmatprep.subr.bf16.mxu0 0
      %1379 = vmatpush1.bf16.xpose.msra.mxu0 0
      %1380 = vmatprep.subr.bf16.mxu0 0
      %1381 = vmatpush1.bf16.xpose.msra.mxu0 0
      %1382 = vmatprep.subr.bf16.mxu0 0
      %1383 = vmatpush1.bf16.xpose.msra.mxu0 0
      %1384 = vmatprep.subr.bf16.mxu0 0
      %1385 = vmatpush1.bf16.xpose.msra.mxu0 0
      %1386 = vmatprep.subr.bf16.mxu0 0
      %1387 = vmatpush1.bf16.xpose.msra.mxu0 0
      %1388 = vmatprep.subr.bf16.mxu0 0
      %1389 = vmatpush1.bf16.xpose.msra.mxu0 0
      %1390 = vmatprep.subr.bf16.mxu0 0
      %1391 = vmatpush1.bf16.xpose.msra.mxu0 0
      %1392 = vmatprep.subr.bf16.mxu0 0
      %1393 = vmatpush1.bf16.xpose.msra.mxu0 0
      %1394 = vmatprep.subr.bf16.mxu0 0
      %1395 = vmatpush1.bf16.xpose.msra.mxu0 0
      %1396 = vmatprep.subr.bf16.mxu0 0
      %1397 = vmatpush1.bf16.xpose.msra.mxu0 0
      %1398 = vmatprep.subr.bf16.mxu0 0
      %1399 = vmatpush1.bf16.xpose.msra.mxu0 0
      %1400 = vmatprep.subr.bf16.mxu0 0
      %1401 = vmatpush1.bf16.xpose.msra.mxu0 0
      %1402 = vmatprep.subr.bf16.mxu0 0
      %1403 = vmatpush1.bf16.xpose.msra.mxu0 0
      %1404 = vmatprep.subr.bf16.mxu0 0
      %1405 = vmatpush1.bf16.xpose.msra.mxu0 0
      %1406 = vmatprep.subr.bf16.mxu0 0
      %1407 = vmatpush1.bf16.xpose.msra.mxu0 0
      %1408 = vmatprep.mubr.bf16.mxu0 0
      %1409 = vmatmul.mubr.bf16.gmra.mrb[0].mxu0 %v1371
      %v1410 = vpop.f32.mrb[0].mxu0
      %v1411 = vadd.f32 0.0, %v1410
      %v1412 = vpop.f32.mrb[0].mxu0
      %v1413 = vpop.f32.mrb[0].mxu0
      %v1414 = vpop.f32.mrb[0].mxu0
      %1415 = vdwg.mxu0
      %v1416 = vsel %vm782, %v1361, -inf
      %1417 = vmax.xlane.f32.xlu0 %v1416
      %v1418 = vpop.xlane.xlu0 %1417
      %v1419 = vsel %vm782, %v1411, -inf
      %1420 = vmax.xlane.f32.xlu0 %v1419
      %v1421 = vpop.xlane.xlu0 %1420
      %v1422 = vsub.f32 %v1361, %v1418
      %v1423 = vsub.f32 %v1411, %v1421
      %v1424 = vmul.f32 %v1422, 1.442695
      %v1425 = vpow.pop %v1424
      %v1426 = vmul.f32 %v1423, 1.442695
      %v1427 = vpow.pop %v1426
      %v1428 = vsel %vm782, %v1425, 0.0
      %1429 = vadd.xlane.f32.xlu0 %v1428
      %v1430 = vpop.xlane.xlu0 %1429
      %v1431 = vsel %vm782, %v1427, 0.0
      %1432 = vadd.xlane.f32.xlu0 %v1431
      %v1433 = vpop.xlane.xlu0 %1432
      %v1434 = vrcp.pop %v1430
      %v1435 = vrcp.pop %v1433
      %v1436 = vmul.f32 %v1425, %v1434
      %v1437 = vmul.f32 %v1427, %v1435
      %v1438 = vpack.c.bf16 %v1436, %v1436
      %v1439 = vpack.c.bf16 %v1437, %v1437
      %1440 = vrot.lane.b32.xlu0 %v778, 48
      %v1441 = vpop.permute.xlu0 %1440
      %v1443 = vsel %vm782, %v1438, 0
      %v1446 = vsel %vm906, %v1441, 0
      %1448 = vmatprep.subr.bf16.mxu0 0
      %1449 = vmatpush1.bf16.msra.mxu0 %v1446
      %1450 = vmatprep.subr.bf16.mxu0 0
      %1451 = vmatpush1.bf16.msra.mxu0 0
      %1452 = vmatprep.subr.bf16.mxu0 0
      %1453 = vmatpush1.bf16.msra.mxu0 0
      %1454 = vmatprep.subr.bf16.mxu0 0
      %1455 = vmatpush1.bf16.msra.mxu0 0
      %1456 = vmatprep.subr.bf16.mxu0 0
      %1457 = vmatpush1.bf16.msra.mxu0 0
      %1458 = vmatprep.subr.bf16.mxu0 0
      %1459 = vmatpush1.bf16.msra.mxu0 0
      %1460 = vmatprep.subr.bf16.mxu0 0
      %1461 = vmatpush1.bf16.msra.mxu0 0
      %1462 = vmatprep.subr.bf16.mxu0 0
      %1463 = vmatpush1.bf16.msra.mxu0 0
      %1464 = vmatprep.subr.bf16.mxu0 0
      %1465 = vmatpush1.bf16.msra.mxu0 0
      %1466 = vmatprep.subr.bf16.mxu0 0
      %1467 = vmatpush1.bf16.msra.mxu0 0
      %1468 = vmatprep.subr.bf16.mxu0 0
      %1469 = vmatpush1.bf16.msra.mxu0 0
      %1470 = vmatprep.subr.bf16.mxu0 0
      %1471 = vmatpush1.bf16.msra.mxu0 0
      %1472 = vmatprep.subr.bf16.mxu0 0
      %1473 = vmatpush1.bf16.msra.mxu0 0
      %1474 = vmatprep.subr.bf16.mxu0 0
      %1475 = vmatpush1.bf16.msra.mxu0 0
      %1476 = vmatprep.subr.bf16.mxu0 0
      %1477 = vmatpush1.bf16.msra.mxu0 0
      %1478 = vmatprep.subr.bf16.mxu0 0
      %1479 = vmatpush1.bf16.msra.mxu0 0
      %1480 = vmatprep.mubr.bf16.mxu0 0
      %1481 = vmatmul.mubr.bf16.gmra.mrb[0].mxu0 %v1443
      %v1482 = vpop.f32.mrb[0].mxu0
      %v1483 = vadd.f32 0.0, %v1482
      %v1484 = vpop.f32.mrb[0].mxu0
      %v1485 = vpop.f32.mrb[0].mxu0
      %v1486 = vpop.f32.mrb[0].mxu0
      %1487 = vdwg.mxu0
      %1488 = vrot.lane.b32.xlu0 %v779, 48
      %v1489 = vpop.permute.xlu0 %1488
      %v1491 = vsel %vm782, %v1439, 0
      %v1494 = vsel %vm906, %v1489, 0
      %1496 = vmatprep.subr.bf16.mxu0 0
      %1497 = vmatpush1.bf16.msra.mxu0 %v1494
      %1498 = vmatprep.subr.bf16.mxu0 0
      %1499 = vmatpush1.bf16.msra.mxu0 0
      %1500 = vmatprep.subr.bf16.mxu0 0
      %1501 = vmatpush1.bf16.msra.mxu0 0
      %1502 = vmatprep.subr.bf16.mxu0 0
      %1503 = vmatpush1.bf16.msra.mxu0 0
      %1504 = vmatprep.subr.bf16.mxu0 0
      %1505 = vmatpush1.bf16.msra.mxu0 0
      %1506 = vmatprep.subr.bf16.mxu0 0
      %1507 = vmatpush1.bf16.msra.mxu0 0
      %1508 = vmatprep.subr.bf16.mxu0 0
      %1509 = vmatpush1.bf16.msra.mxu0 0
      %1510 = vmatprep.subr.bf16.mxu0 0
      %1511 = vmatpush1.bf16.msra.mxu0 0
      %1512 = vmatprep.subr.bf16.mxu0 0
      %1513 = vmatpush1.bf16.msra.mxu0 0
      %1514 = vmatprep.subr.bf16.mxu0 0
      %1515 = vmatpush1.bf16.msra.mxu0 0
      %1516 = vmatprep.subr.bf16.mxu0 0
      %1517 = vmatpush1.bf16.msra.mxu0 0
      %1518 = vmatprep.subr.bf16.mxu0 0
      %1519 = vmatpush1.bf16.msra.mxu0 0
      %1520 = vmatprep.subr.bf16.mxu0 0
      %1521 = vmatpush1.bf16.msra.mxu0 0
      %1522 = vmatprep.subr.bf16.mxu0 0
      %1523 = vmatpush1.bf16.msra.mxu0 0
      %1524 = vmatprep.subr.bf16.mxu0 0
      %1525 = vmatpush1.bf16.msra.mxu0 0
      %1526 = vmatprep.subr.bf16.mxu0 0
      %1527 = vmatpush1.bf16.msra.mxu0 0
      %1528 = vmatprep.mubr.bf16.mxu0 0
      %1529 = vmatmul.mubr.bf16.gmra.mrb[0].mxu0 %v1491
      %v1530 = vpop.f32.mrb[0].mxu0
      %v1531 = vadd.f32 0.0, %v1530
      %v1532 = vpop.f32.mrb[0].mxu0
      %v1533 = vpop.f32.mrb[0].mxu0
      %v1534 = vpop.f32.mrb[0].mxu0
      %1535 = vdwg.mxu0
      %v1536 = vpack.c.bf16 %v1531, %v1483
      %v1537 = vld [vmem:[%s616 + $0x8] sm:$0xf]
      %v1539 = vsel %vm782, %v1536, 0
      %v1542 = vsel %vm906, %v1537, 0
      %1544 = vmatprep.subr.bf16.mxu0 0
      %1545 = vmatpush1.bf16.msra.mxu0 %v1542
      %1546 = vmatprep.subr.bf16.mxu0 0
      %1547 = vmatpush1.bf16.msra.mxu0 0
      %1548 = vmatprep.subr.bf16.mxu0 0
      %1549 = vmatpush1.bf16.msra.mxu0 0
      %1550 = vmatprep.subr.bf16.mxu0 0
      %1551 = vmatpush1.bf16.msra.mxu0 0
      %1552 = vmatprep.subr.bf16.mxu0 0
      %1553 = vmatpush1.bf16.msra.mxu0 0
      %1554 = vmatprep.subr.bf16.mxu0 0
      %1555 = vmatpush1.bf16.msra.mxu0 0
      %1556 = vmatprep.subr.bf16.mxu0 0
      %1557 = vmatpush1.bf16.msra.mxu0 0
      %1558 = vmatprep.subr.bf16.mxu0 0
      %1559 = vmatpush1.bf16.msra.mxu0 0
      %1560 = vmatprep.subr.bf16.mxu0 0
      %1561 = vmatpush1.bf16.msra.mxu0 0
      %1562 = vmatprep.subr.bf16.mxu0 0
      %1563 = vmatpush1.bf16.msra.mxu0 0
      %1564 = vmatprep.subr.bf16.mxu0 0
      %1565 = vmatpush1.bf16.msra.mxu0 0
      %1566 = vmatprep.subr.bf16.mxu0 0
      %1567 = vmatpush1.bf16.msra.mxu0 0
      %1568 = vmatprep.subr.bf16.mxu0 0
      %1569 = vmatpush1.bf16.msra.mxu0 0
      %1570 = vmatprep.subr.bf16.mxu0 0
      %1571 = vmatpush1.bf16.msra.mxu0 0
      %1572 = vmatprep.subr.bf16.mxu0 0
      %1573 = vmatpush1.bf16.msra.mxu0 0
      %1574 = vmatprep.subr.bf16.mxu0 0
      %1575 = vmatpush1.bf16.msra.mxu0 0
      %1576 = vmatprep.mubr.bf16.mxu0 0
      %1577 = vmatmul.mubr.bf16.gmra.mrb[0].mxu0 %v1539
      %v1578 = vpop.f32.mrb[0].mxu0
      %v1579 = vadd.f32 0.0, %v1578
      %v1580 = vpop.f32.mrb[0].mxu0
      %v1581 = vpop.f32.mrb[0].mxu0
      %v1582 = vadd.f32 0.0, %v1581
      %v1583 = vpop.f32.mrb[0].mxu0
      %1584 = vdwg.mxu0
      %v1585 = vadd.f32 %v1310, %v1579
      %v1586 = vadd.f32 %v1313, %v1582
      %1587 = vrot.lane.b32.xlu0 %v778, 104
      %v1588 = vpop.permute.xlu0 %1587
      %1589 = vrot.lane.b32.xlu0 %v778, 72
      %v1590 = vpop.permute.xlu0 %1589
      %v1592 = vsel %vm782, %v1588, 0
      %v1595 = vsel %vm782, %v1590, 0
      %1597 = vmatprep.subr.bf16.mxu0 0
      %1598 = vmatpush1.bf16.xpose.msra.mxu0 %v1595
      %1599 = vmatprep.subr.bf16.mxu0 0
      %1600 = vmatpush1.bf16.xpose.msra.mxu0 0
      %1601 = vmatprep.subr.bf16.mxu0 0
      %1602 = vmatpush1.bf16.xpose.msra.mxu0 0
      %1603 = vmatprep.subr.bf16.mxu0 0
      %1604 = vmatpush1.bf16.xpose.msra.mxu0 0
      %1605 = vmatprep.subr.bf16.mxu0 0
      %1606 = vmatpush1.bf16.xpose.msra.mxu0 0
      %1607 = vmatprep.subr.bf16.mxu0 0
      %1608 = vmatpush1.bf16.xpose.msra.mxu0 0
      %1609 = vmatprep.subr.bf16.mxu0 0
      %1610 = vmatpush1.bf16.xpose.msra.mxu0 0
      %1611 = vmatprep.subr.bf16.mxu0 0
      %1612 = vmatpush1.bf16.xpose.msra.mxu0 0
      %1613 = vmatprep.subr.bf16.mxu0 0
      %1614 = vmatpush1.bf16.xpose.msra.mxu0 0
      %1615 = vmatprep.subr.bf16.mxu0 0
      %1616 = vmatpush1.bf16.xpose.msra.mxu0 0
      %1617 = vmatprep.subr.bf16.mxu0 0
      %1618 = vmatpush1.bf16.xpose.msra.mxu0 0
      %1619 = vmatprep.subr.bf16.mxu0 0
      %1620 = vmatpush1.bf16.xpose.msra.mxu0 0
      %1621 = vmatprep.subr.bf16.mxu0 0
      %1622 = vmatpush1.bf16.xpose.msra.mxu0 0
      %1623 = vmatprep.subr.bf16.mxu0 0
      %1624 = vmatpush1.bf16.xpose.msra.mxu0 0
      %1625 = vmatprep.subr.bf16.mxu0 0
      %1626 = vmatpush1.bf16.xpose.msra.mxu0 0
      %1627 = vmatprep.subr.bf16.mxu0 0
      %1628 = vmatpush1.bf16.xpose.msra.mxu0 0
      %1629 = vmatprep.mubr.bf16.mxu0 0
      %1630 = vmatmul.mubr.bf16.gmra.mrb[0].mxu0 %v1592
      %v1631 = vpop.f32.mrb[0].mxu0
      %v1632 = vadd.f32 0.0, %v1631
      %v1633 = vpop.f32.mrb[0].mxu0
      %v1634 = vpop.f32.mrb[0].mxu0
      %v1635 = vpop.f32.mrb[0].mxu0
      %1636 = vdwg.mxu0
      %1637 = vrot.lane.b32.xlu0 %v779, 104
      %v1638 = vpop.permute.xlu0 %1637
      %1639 = vrot.lane.b32.xlu0 %v779, 72
      %v1640 = vpop.permute.xlu0 %1639
      %v1642 = vsel %vm782, %v1638, 0
      %v1645 = vsel %vm782, %v1640, 0
      %1647 = vmatprep.subr.bf16.mxu0 0
      %1648 = vmatpush1.bf16.xpose.msra.mxu0 %v1645
      %1649 = vmatprep.subr.bf16.mxu0 0
      %1650 = vmatpush1.bf16.xpose.msra.mxu0 0
      %1651 = vmatprep.subr.bf16.mxu0 0
      %1652 = vmatpush1.bf16.xpose.msra.mxu0 0
      %1653 = vmatprep.subr.bf16.mxu0 0
      %1654 = vmatpush1.bf16.xpose.msra.mxu0 0
      %1655 = vmatprep.subr.bf16.mxu0 0
      %1656 = vmatpush1.bf16.xpose.msra.mxu0 0
      %1657 = vmatprep.subr.bf16.mxu0 0
      %1658 = vmatpush1.bf16.xpose.msra.mxu0 0
      %1659 = vmatprep.subr.bf16.mxu0 0
      %1660 = vmatpush1.bf16.xpose.msra.mxu0 0
      %1661 = vmatprep.subr.bf16.mxu0 0
      %1662 = vmatpush1.bf16.xpose.msra.mxu0 0
      %1663 = vmatprep.subr.bf16.mxu0 0
      %1664 = vmatpush1.bf16.xpose.msra.mxu0 0
      %1665 = vmatprep.subr.bf16.mxu0 0
      %1666 = vmatpush1.bf16.xpose.msra.mxu0 0
      %1667 = vmatprep.subr.bf16.mxu0 0
      %1668 = vmatpush1.bf16.xpose.msra.mxu0 0
      %1669 = vmatprep.subr.bf16.mxu0 0
      %1670 = vmatpush1.bf16.xpose.msra.mxu0 0
      %1671 = vmatprep.subr.bf16.mxu0 0
      %1672 = vmatpush1.bf16.xpose.msra.mxu0 0
      %1673 = vmatprep.subr.bf16.mxu0 0
      %1674 = vmatpush1.bf16.xpose.msra.mxu0 0
      %1675 = vmatprep.subr.bf16.mxu0 0
      %1676 = vmatpush1.bf16.xpose.msra.mxu0 0
      %1677 = vmatprep.subr.bf16.mxu0 0
      %1678 = vmatpush1.bf16.xpose.msra.mxu0 0
      %1679 = vmatprep.mubr.bf16.mxu0 0
      %1680 = vmatmul.mubr.bf16.gmra.mrb[0].mxu0 %v1642
      %v1681 = vpop.f32.mrb[0].mxu0
      %v1682 = vadd.f32 0.0, %v1681
      %v1683 = vpop.f32.mrb[0].mxu0
      %v1684 = vpop.f32.mrb[0].mxu0
      %v1685 = vpop.f32.mrb[0].mxu0
      %1686 = vdwg.mxu0
      %v1687 = vsel %vm782, %v1632, -inf
      %1688 = vmax.xlane.f32.xlu0 %v1687
      %v1689 = vpop.xlane.xlu0 %1688
      %v1690 = vsel %vm782, %v1682, -inf
      %1691 = vmax.xlane.f32.xlu0 %v1690
      %v1692 = vpop.xlane.xlu0 %1691
      %v1693 = vsub.f32 %v1632, %v1689
      %v1694 = vsub.f32 %v1682, %v1692
      %v1695 = vmul.f32 %v1693, 1.442695
      %v1696 = vpow.pop %v1695
      %v1697 = vmul.f32 %v1694, 1.442695
      %v1698 = vpow.pop %v1697
      %v1699 = vsel %vm782, %v1696, 0.0
      %1700 = vadd.xlane.f32.xlu0 %v1699
      %v1701 = vpop.xlane.xlu0 %1700
      %v1702 = vsel %vm782, %v1698, 0.0
      %1703 = vadd.xlane.f32.xlu0 %v1702
      %v1704 = vpop.xlane.xlu0 %1703
      %v1705 = vrcp.pop %v1701
      %v1706 = vrcp.pop %v1704
      %v1707 = vmul.f32 %v1696, %v1705
      %v1708 = vmul.f32 %v1698, %v1706
      %v1709 = vpack.c.bf16 %v1707, %v1707
      %v1710 = vpack.c.bf16 %v1708, %v1708
      %1711 = vrot.lane.b32.xlu0 %v778, 40
      %v1712 = vpop.permute.xlu0 %1711
      %v1714 = vsel %vm782, %v1709, 0
      %v1717 = vsel %vm906, %v1712, 0
      %1719 = vmatprep.subr.bf16.mxu0 0
      %1720 = vmatpush1.bf16.msra.mxu0 %v1717
      %1721 = vmatprep.subr.bf16.mxu0 0
      %1722 = vmatpush1.bf16.msra.mxu0 0
      %1723 = vmatprep.subr.bf16.mxu0 0
      %1724 = vmatpush1.bf16.msra.mxu0 0
      %1725 = vmatprep.subr.bf16.mxu0 0
      %1726 = vmatpush1.bf16.msra.mxu0 0
      %1727 = vmatprep.subr.bf16.mxu0 0
      %1728 = vmatpush1.bf16.msra.mxu0 0
      %1729 = vmatprep.subr.bf16.mxu0 0
      %1730 = vmatpush1.bf16.msra.mxu0 0
      %1731 = vmatprep.subr.bf16.mxu0 0
      %1732 = vmatpush1.bf16.msra.mxu0 0
      %1733 = vmatprep.subr.bf16.mxu0 0
      %1734 = vmatpush1.bf16.msra.mxu0 0
      %1735 = vmatprep.subr.bf16.mxu0 0
      %1736 = vmatpush1.bf16.msra.mxu0 0
      %1737 = vmatprep.subr.bf16.mxu0 0
      %1738 = vmatpush1.bf16.msra.mxu0 0
      %1739 = vmatprep.subr.bf16.mxu0 0
      %1740 = vmatpush1.bf16.msra.mxu0 0
      %1741 = vmatprep.subr.bf16.mxu0 0
      %1742 = vmatpush1.bf16.msra.mxu0 0
      %1743 = vmatprep.subr.bf16.mxu0 0
      %1744 = vmatpush1.bf16.msra.mxu0 0
      %1745 = vmatprep.subr.bf16.mxu0 0
      %1746 = vmatpush1.bf16.msra.mxu0 0
      %1747 = vmatprep.subr.bf16.mxu0 0
      %1748 = vmatpush1.bf16.msra.mxu0 0
      %1749 = vmatprep.subr.bf16.mxu0 0
      %1750 = vmatpush1.bf16.msra.mxu0 0
      %1751 = vmatprep.mubr.bf16.mxu0 0
      %1752 = vmatmul.mubr.bf16.gmra.mrb[0].mxu0 %v1714
      %v1753 = vpop.f32.mrb[0].mxu0
      %v1754 = vadd.f32 0.0, %v1753
      %v1755 = vpop.f32.mrb[0].mxu0
      %v1756 = vpop.f32.mrb[0].mxu0
      %v1757 = vpop.f32.mrb[0].mxu0
      %1758 = vdwg.mxu0
      %1759 = vrot.lane.b32.xlu0 %v779, 40
      %v1760 = vpop.permute.xlu0 %1759
      %v1762 = vsel %vm782, %v1710, 0
      %v1765 = vsel %vm906, %v1760, 0
      %1767 = vmatprep.subr.bf16.mxu0 0
      %1768 = vmatpush1.bf16.msra.mxu0 %v1765
      %1769 = vmatprep.subr.bf16.mxu0 0
      %1770 = vmatpush1.bf16.msra.mxu0 0
      %1771 = vmatprep.subr.bf16.mxu0 0
      %1772 = vmatpush1.bf16.msra.mxu0 0
      %1773 = vmatprep.subr.bf16.mxu0 0
      %1774 = vmatpush1.bf16.msra.mxu0 0
      %1775 = vmatprep.subr.bf16.mxu0 0
      %1776 = vmatpush1.bf16.msra.mxu0 0
      %1777 = vmatprep.subr.bf16.mxu0 0
      %1778 = vmatpush1.bf16.msra.mxu0 0
      %1779 = vmatprep.subr.bf16.mxu0 0
      %1780 = vmatpush1.bf16.msra.mxu0 0
      %1781 = vmatprep.subr.bf16.mxu0 0
      %1782 = vmatpush1.bf16.msra.mxu0 0
      %1783 = vmatprep.subr.bf16.mxu0 0
      %1784 = vmatpush1.bf16.msra.mxu0 0
      %1785 = vmatprep.subr.bf16.mxu0 0
      %1786 = vmatpush1.bf16.msra.mxu0 0
      %1787 = vmatprep.subr.bf16.mxu0 0
      %1788 = vmatpush1.bf16.msra.mxu0 0
      %1789 = vmatprep.subr.bf16.mxu0 0
      %1790 = vmatpush1.bf16.msra.mxu0 0
      %1791 = vmatprep.subr.bf16.mxu0 0
      %1792 = vmatpush1.bf16.msra.mxu0 0
      %1793 = vmatprep.subr.bf16.mxu0 0
      %1794 = vmatpush1.bf16.msra.mxu0 0
      %1795 = vmatprep.subr.bf16.mxu0 0
      %1796 = vmatpush1.bf16.msra.mxu0 0
      %1797 = vmatprep.subr.bf16.mxu0 0
      %1798 = vmatpush1.bf16.msra.mxu0 0
      %1799 = vmatprep.mubr.bf16.mxu0 0
      %1800 = vmatmul.mubr.bf16.gmra.mrb[0].mxu0 %v1762
      %v1801 = vpop.f32.mrb[0].mxu0
      %v1802 = vadd.f32 0.0, %v1801
      %v1803 = vpop.f32.mrb[0].mxu0
      %v1804 = vpop.f32.mrb[0].mxu0
      %v1805 = vpop.f32.mrb[0].mxu0
      %1806 = vdwg.mxu0
      %v1807 = vpack.c.bf16 %v1802, %v1754
      %v1808 = vld [vmem:[%s616 + $0xc] sm:$0xf]
      %v1810 = vsel %vm782, %v1807, 0
      %v1813 = vsel %vm906, %v1808, 0
      %1815 = vmatprep.subr.bf16.mxu0 0
      %1816 = vmatpush1.bf16.msra.mxu0 %v1813
      %1817 = vmatprep.subr.bf16.mxu0 0
      %1818 = vmatpush1.bf16.msra.mxu0 0
      %1819 = vmatprep.subr.bf16.mxu0 0
      %1820 = vmatpush1.bf16.msra.mxu0 0
      %1821 = vmatprep.subr.bf16.mxu0 0
      %1822 = vmatpush1.bf16.msra.mxu0 0
      %1823 = vmatprep.subr.bf16.mxu0 0
      %1824 = vmatpush1.bf16.msra.mxu0 0
      %1825 = vmatprep.subr.bf16.mxu0 0
      %1826 = vmatpush1.bf16.msra.mxu0 0
      %1827 = vmatprep.subr.bf16.mxu0 0
      %1828 = vmatpush1.bf16.msra.mxu0 0
      %1829 = vmatprep.subr.bf16.mxu0 0
      %1830 = vmatpush1.bf16.msra.mxu0 0
      %1831 = vmatprep.subr.bf16.mxu0 0
      %1832 = vmatpush1.bf16.msra.mxu0 0
      %1833 = vmatprep.subr.bf16.mxu0 0
      %1834 = vmatpush1.bf16.msra.mxu0 0
      %1835 = vmatprep.subr.bf16.mxu0 0
      %1836 = vmatpush1.bf16.msra.mxu0 0
      %1837 = vmatprep.subr.bf16.mxu0 0
      %1838 = vmatpush1.bf16.msra.mxu0 0
      %1839 = vmatprep.subr.bf16.mxu0 0
      %1840 = vmatpush1.bf16.msra.mxu0 0
      %1841 = vmatprep.subr.bf16.mxu0 0
      %1842 = vmatpush1.bf16.msra.mxu0 0
      %1843 = vmatprep.subr.bf16.mxu0 0
      %1844 = vmatpush1.bf16.msra.mxu0 0
      %1845 = vmatprep.subr.bf16.mxu0 0
      %1846 = vmatpush1.bf16.msra.mxu0 0
      %1847 = vmatprep.mubr.bf16.mxu0 0
      %1848 = vmatmul.mubr.bf16.gmra.mrb[0].mxu0 %v1810
      %v1849 = vpop.f32.mrb[0].mxu0
      %v1850 = vadd.f32 0.0, %v1849
      %v1851 = vpop.f32.mrb[0].mxu0
      %v1852 = vpop.f32.mrb[0].mxu0
      %v1853 = vadd.f32 0.0, %v1852
      %v1854 = vpop.f32.mrb[0].mxu0
      %1855 = vdwg.mxu0
      %v1856 = vadd.f32 %v1585, %v1850
      %v1857 = vadd.f32 %v1586, %v1853
      %v1858 = vadd.f32 %v658, %v1856
      %v1859 = vadd.f32 %v659, %v1857
      %v1860 = vld [vmem:[%s619] sm:$0x1]
      %v1862 = vlaneseq
      %v1863 = vshrl.u32 %v1862, 7
      %v1864 = vsub.s32 0, %v1863
      %v1865 = vrot.slane %v1860, %v1864
      %v1867 = vadd.f32 %v1858, %v1865
      %v1868 = vadd.f32 %v1859, %v1865
      %v1869 = vld [vmem:[%s622] sm:$0x1]
      %v1870 = vld [vmem:[%s625] sm:$0x1]
      %v1871 = vsel %vm662, %v1867, 0.0
      %1872 = vadd.xlane.f32.xlu0 %v1871
      %v1873 = vpop.xlane.xlu0 %1872
      %v1874 = vsel %vm662, %v1868, 0.0
      %1875 = vadd.xlane.f32.xlu0 %v1874
      %v1876 = vpop.xlane.xlu0 %1875
      %v1877 = vmul.f32 %v1873, %v669
      %v1878 = vmul.f32 %v1876, %v669
      %v1879 = vsub.f32 %v1867, %v1877
      %v1880 = vsub.f32 %v1868, %v1878
      %v1881 = vmul.f32 %v1879, %v1879
      %v1882 = vmul.f32 %v1880, %v1880
      %v1883 = vsel %vm662, %v1881, 0.0
      %1884 = vadd.xlane.f32.xlu0 %v1883
      %v1885 = vpop.xlane.xlu0 %1884
      %v1886 = vsel %vm662, %v1882, 0.0
      %1887 = vadd.xlane.f32.xlu0 %v1886
      %v1888 = vpop.xlane.xlu0 %1887
      %v1889 = vmul.f32 %v1885, %v669
      %v1890 = vmul.f32 %v1888, %v669
      %v1891 = vadd.f32 %v1889, 1e-05
      %v1892 = vadd.f32 %v1890, 1e-05
      %v1893 = vrsqrt.pop %v1891
      %v1894 = vrsqrt.pop %v1892
      %v1895 = vmul.f32 %v1879, %v1893
      %v1896 = vmul.f32 %v1880, %v1894
      %v1898 = vlaneseq
      %v1899 = vshrl.u32 %v1898, 7
      %v1900 = vsub.s32 0, %v1899
      %v1901 = vrot.slane %v1869, %v1900
      %v1903 = vmul.f32 %v1895, %v1901
      %v1904 = vmul.f32 %v1896, %v1901
      %v1906 = vlaneseq
      %v1907 = vshrl.u32 %v1906, 7
      %v1908 = vsub.s32 0, %v1907
      %v1909 = vrot.slane %v1870, %v1908
      %v1911 = vadd.f32 %v1903, %v1909
      %v1912 = vadd.f32 %v1904, %v1909
      %v1913 = vpack.c.bf16 %v1912, %v1911
      %v1914 = vld [vmem:[%s630] sm:$0xf]
      %v1915 = vld [vmem:[%s630 + $0x4] sm:$0xf]
      %v1916 = vld [vmem:[%s630 + $0x8] sm:$0xf]
      %v1917 = vld [vmem:[%s630 + $0xc] sm:$0xf]
      %v1918 = vld [vmem:[%s633] sm:$0x1]
      %v1920 = vlaneseq
      %v1921 = vshrl.u32 %v1920, 7
      %v1922 = vsub.s32 0, %v1921
      %v1923 = vrot.slane %v1918, %v1922
      %v1929 = vunpack.c.l.b16 %v1914
      %v1930 = vunpack.c.l.b16 %v1915
      %v1931 = vunpack.c.l.b16 %v1916
      %v1932 = vunpack.c.l.b16 %v1917
      %v1933 = vpack.c.b16 %v1930, %v1929
      %v1934 = vpack.c.b16 %v1932, %v1931
      %v1938 = vsel %vm662, %v1913, 0
      %1940 = vmatprep.subr.bf16.mxu0 0
      %1941 = vmatpush1.bf16.msra.mxu0 %v1933
      %1942 = vmatprep.subr.bf16.mxu0 0
      %1943 = vmatpush1.bf16.msra.mxu0 %v1934
      %1944 = vmatprep.subr.bf16.mxu0 0
      %1945 = vmatpush1.bf16.msra.mxu0 0
      %1946 = vmatprep.subr.bf16.mxu0 0
      %1947 = vmatpush1.bf16.msra.mxu0 0
      %1948 = vmatprep.subr.bf16.mxu0 0
      %1949 = vmatpush1.bf16.msra.mxu0 0
      %1950 = vmatprep.subr.bf16.mxu0 0
      %1951 = vmatpush1.bf16.msra.mxu0 0
      %1952 = vmatprep.subr.bf16.mxu0 0
      %1953 = vmatpush1.bf16.msra.mxu0 0
      %1954 = vmatprep.subr.bf16.mxu0 0
      %1955 = vmatpush1.bf16.msra.mxu0 0
      %1956 = vmatprep.subr.bf16.mxu0 0
      %1957 = vmatpush1.bf16.msra.mxu0 0
      %1958 = vmatprep.subr.bf16.mxu0 0
      %1959 = vmatpush1.bf16.msra.mxu0 0
      %1960 = vmatprep.subr.bf16.mxu0 0
      %1961 = vmatpush1.bf16.msra.mxu0 0
      %1962 = vmatprep.subr.bf16.mxu0 0
      %1963 = vmatpush1.bf16.msra.mxu0 0
      %1964 = vmatprep.subr.bf16.mxu0 0
      %1965 = vmatpush1.bf16.msra.mxu0 0
      %1966 = vmatprep.subr.bf16.mxu0 0
      %1967 = vmatpush1.bf16.msra.mxu0 0
      %1968 = vmatprep.subr.bf16.mxu0 0
      %1969 = vmatpush1.bf16.msra.mxu0 0
      %1970 = vmatprep.subr.bf16.mxu0 0
      %1971 = vmatpush1.bf16.msra.mxu0 0
      %1972 = vmatprep.mubr.bf16.mxu0 0
      %1973 = vmatmul.mubr.bf16.gmra.mrb[0].mxu0 %v1938
      %v1974 = vpop.f32.mrb[0].mxu0
      %v1975 = vadd.f32 %v1923, %v1974
      %v1976 = vpop.f32.mrb[0].mxu0
      %v1977 = vpop.f32.mrb[0].mxu0
      %v1978 = vadd.f32 %v1923, %v1977
      %v1979 = vpop.f32.mrb[0].mxu0
      %1980 = vdwg.mxu0
      %v1981 = vmul.f32 %v1975, 1.702
      %v1982 = vmul.f32 %v1978, 1.702
      %v1983 = vxor.u32 %v1981, 2147483648
      %v1984 = vxor.u32 %v1982, 2147483648
      %v1985 = vmul.f32 %v1983, 1.442695
      %v1986 = vpow.pop %v1985
      %v1987 = vmul.f32 %v1984, 1.442695
      %v1988 = vpow.pop %v1987
      %v1989 = vadd.f32 %v1986, 1.0
      %v1990 = vadd.f32 %v1988, 1.0
      %v1991 = vrcp.pop %v1989
      %v1992 = vmul.f32 1.0, %v1991
      %v1993 = vrcp.pop %v1990
      %v1994 = vmul.f32 1.0, %v1993
      %v1995 = vmul.f32 %v1975, %v1992
      %v1996 = vmul.f32 %v1978, %v1994
      %v1997 = vpack.c.bf16 %v1996, %v1995
      %v1998 = vld [vmem:[%s638] sm:$0xf]
      %v1999 = vld [vmem:[%s638 + $0x4] sm:$0xf]
      %v2000 = vld [vmem:[%s638 + $0x8] sm:$0xf]
      %v2001 = vld [vmem:[%s638 + $0xc] sm:$0xf]
      %v2002 = vld [vmem:[%s638 + $0x10] sm:$0xf]
      %v2003 = vld [vmem:[%s638 + $0x14] sm:$0xf]
      %v2004 = vld [vmem:[%s638 + $0x18] sm:$0xf]
      %v2005 = vld [vmem:[%s638 + $0x1c] sm:$0xf]
      %v2006 = vld [vmem:[%s638 + $0x20] sm:$0xf]
      %v2007 = vld [vmem:[%s638 + $0x24] sm:$0xf]
      %v2008 = vld [vmem:[%s638 + $0x28] sm:$0xf]
      %v2009 = vld [vmem:[%s638 + $0x2c] sm:$0xf]
      %v2010 = vld [vmem:[%s638 + $0x30] sm:$0xf]
      %v2011 = vld [vmem:[%s638 + $0x34] sm:$0xf]
      %v2012 = vld [vmem:[%s638 + $0x38] sm:$0xf]
      %v2013 = vld [vmem:[%s638 + $0x3c] sm:$0xf]
      %v2014 = vld [vmem:[%s641] sm:$0x1]
      %v2016 = vlaneseq
      %v2017 = vshrl.u32 %v2016, 7
      %v2018 = vsub.s32 0, %v2017
      %v2019 = vrot.slane %v2014, %v2018
      %v2037 = vunpack.c.l.b16 %v1998
      %v2038 = vunpack.c.l.b16 %v1999
      %v2039 = vunpack.c.l.b16 %v2000
      %v2040 = vunpack.c.l.b16 %v2001
      %v2041 = vunpack.c.l.b16 %v2002
      %v2042 = vunpack.c.l.b16 %v2003
      %v2043 = vunpack.c.l.b16 %v2004
      %v2044 = vunpack.c.l.b16 %v2005
      %v2045 = vunpack.c.l.b16 %v2006
      %v2046 = vunpack.c.l.b16 %v2007
      %v2047 = vunpack.c.l.b16 %v2008
      %v2048 = vunpack.c.l.b16 %v2009
      %v2049 = vunpack.c.l.b16 %v2010
      %v2050 = vunpack.c.l.b16 %v2011
      %v2051 = vunpack.c.l.b16 %v2012
      %v2052 = vunpack.c.l.b16 %v2013
      %v2053 = vpack.c.b16 %v2038, %v2037
      %v2054 = vpack.c.b16 %v2040, %v2039
      %v2055 = vpack.c.b16 %v2042, %v2041
      %v2056 = vpack.c.b16 %v2044, %v2043
      %v2057 = vpack.c.b16 %v2046, %v2045
      %v2058 = vpack.c.b16 %v2048, %v2047
      %v2059 = vpack.c.b16 %v2050, %v2049
      %v2060 = vpack.c.b16 %v2052, %v2051
      %2069 = vmatprep.subr.bf16.mxu0 0
      %2070 = vmatpush1.bf16.msra.mxu0 %v2053
      %2071 = vmatprep.subr.bf16.mxu0 0
      %2072 = vmatpush1.bf16.msra.mxu0 %v2054
      %2073 = vmatprep.subr.bf16.mxu0 0
      %2074 = vmatpush1.bf16.msra.mxu0 %v2055
      %2075 = vmatprep.subr.bf16.mxu0 0
      %2076 = vmatpush1.bf16.msra.mxu0 %v2056
      %2077 = vmatprep.subr.bf16.mxu0 0
      %2078 = vmatpush1.bf16.msra.mxu0 %v2057
      %2079 = vmatprep.subr.bf16.mxu0 0
      %2080 = vmatpush1.bf16.msra.mxu0 %v2058
      %2081 = vmatprep.subr.bf16.mxu0 0
      %2082 = vmatpush1.bf16.msra.mxu0 %v2059
      %2083 = vmatprep.subr.bf16.mxu0 0
      %2084 = vmatpush1.bf16.msra.mxu0 %v2060
      %2085 = vmatprep.subr.bf16.mxu0 0
      %2086 = vmatpush1.bf16.msra.mxu0 0
      %2087 = vmatprep.subr.bf16.mxu0 0
      %2088 = vmatpush1.bf16.msra.mxu0 0
      %2089 = vmatprep.subr.bf16.mxu0 0
      %2090 = vmatpush1.bf16.msra.mxu0 0
      %2091 = vmatprep.subr.bf16.mxu0 0
      %2092 = vmatpush1.bf16.msra.mxu0 0
      %2093 = vmatprep.subr.bf16.mxu0 0
      %2094 = vmatpush1.bf16.msra.mxu0 0
      %2095 = vmatprep.subr.bf16.mxu0 0
      %2096 = vmatpush1.bf16.msra.mxu0 0
      %2097 = vmatprep.subr.bf16.mxu0 0
      %2098 = vmatpush1.bf16.msra.mxu0 0
      %2099 = vmatprep.subr.bf16.mxu0 0
      %2100 = vmatpush1.bf16.msra.mxu0 0
      %2101 = vmatprep.mubr.bf16.mxu0 0
      %2102 = vmatmul.mubr.bf16.gmra.mrb[0].mxu0 %v1997
      %v2103 = vpop.f32.mrb[0].mxu0
      %v2104 = vadd.f32 %v2019, %v2103
      %v2105 = vpop.f32.mrb[0].mxu0
      %v2106 = vpop.f32.mrb[0].mxu0
      %v2107 = vadd.f32 %v2019, %v2106
      %v2108 = vpop.f32.mrb[0].mxu0
      %2109 = vdwg.mxu0
      %v2110 = vadd.f32 %v1867, %v2104
      %v2111 = vadd.f32 %v1868, %v2107
      %2112 = vst.msk [vmem:[%s646] sm:$0xff] %vm662, %v2110
      %2113 = vst.msk [vmem:[%s646 + $0x8] sm:$0xff] %vm662, %v2111
      %s2114 = smul.u32 2, %s28
      %p2115 = scmp.lt.s32.totalorder %s2114, 1
      %s2116 = scalar_select %p2115, %s2114, 1
      %s2117 = smul.addr %s2116, 8
      %s2118 = scalar_lea.vmem %s13, %s2117
      // Predicated region
      $region77: #{transformer_forward.1} parent=71 // pred_check
        %p2119 = pneg %p392
      $region78: #{transformer_forward.1} parent=71 // pred_check_branch
        %2121 = sbr.rel (%p2119) target = $region80
      $region79: #{transformer_forward.1} parent=71 // pred_region
        %s2122 = smul.u32 2, %s28
      $region80: #{transformer_forward.1} parent=71 // pred_fallthru
        _
      // Predicated region
      $region81: #{transformer_forward.1} parent=71 // pred_check
        %p2123 = pneg %p392
      $region82: #{transformer_forward.1} parent=71 // pred_check_branch
        %2125 = sbr.rel (%p2123) target = $region84
      $region83: #{transformer_forward.1} parent=71 // pred_region
        %s2126 = smul.u32 2, %s28
        %p2127 = scmp.lt.s32.totalorder %s2126, 1
        %s2128 = scalar_select %p2127, %s2126, 1
        %s2129 = smul.addr %s2128, 8
        %s2130 = scalar_lea.vmem %s13, %s2129
      $region84: #{transformer_forward.1} parent=71 // pred_fallthru
        _
    $region72: #{transformer_forward.1} parent=5 // pred_fallthru
      _
    %p2131 = scmp.le.s32.totalorder 2, %s19
    // Predicated region
    $region85: #{transformer_forward.1} parent=5 // pred_check
      %p2132 = pneg %p2131
    $region86: #{transformer_forward.1} parent=5 // pred_check_branch
      %2134 = sbr.rel (%p2132) target = $region88
    $region87: #{transformer_forward.1} parent=5 // pred_region
      %s2135 = ssub.s32 %s19, 2
    $region88: #{transformer_forward.1} parent=5 // pred_fallthru
      _
  $region6: #{transformer_forward.1} parent=0 // loop_footer
    %s23 = sadd.s32 1, %s19
  $region7: #{transformer_forward.1} parent=0 // loop_footer_branch
    %18 = sbr.rel target = $region3
  $region8: #{transformer_forward.1} parent=0 // loop_exit
    _

</llo_original>
